<compile_context>
chip_gen: v7x
topology: tpu7x:2x2x1
jax: 0.10.0
libtpu: 0.0.40
codegen_flags: <defaults>
</compile_context>

<pallas_src>
import jax
import jax.numpy as jnp
import numpy as np
from jax.experimental import pallas as pl
from jax.experimental.pallas import tpu as pltpu

# ----- module hyper-parameters (mirroring the PyTorch script) -----
NUM_LAYERS = 5
DILATIONS = [2 ** i for i in range(NUM_LAYERS)]          # [1, 2, 4, 8, 16]
KERNEL_SIZE = 3
TRAINING_SPAN = 32                                        # sequence length T
INPUT_FEATURES = 8                                        # small synthetic feature count
HIDDEN_FEATURES = INPUT_FEATURES * 4                      # = 32
BATCH = 2


def make_tcn_kernel(batch, seq_len, layer_meta, fc_row, out_lanes):
    """Build the Pallas kernel.  `layer_meta[l]` is a list of live taps
    (shift, row_start, row_stop) indexing the packed weight slab; `fc_row`
    is the slab row holding the fc weight.  All static / fully unrolled."""
    T = seq_len
    BT = batch * seq_len

    def tcn_kernel(x_ref, w_ref, fcb_ref, out_ref):
        # Single (BT, 1) local-time column; every causal mask broadcasts from it.
        local_t = jax.lax.broadcasted_iota(jnp.int32, (BT, 1), 0) % T

        def shifted(h, shift):
            """Causal shift down by `shift` within each batch (zeros on top)."""
            if shift == 0:
                return h
            rolled = pltpu.roll(h, shift, axis=0)          # XLU sublane rotate
            # rows with local_t < shift would wrap across the batch boundary /
            # into padding -> zero them (VPU select, (BT,1) mask broadcasts).
            return jnp.where(local_t < shift, 0.0, rolled)

        # ---- conv stack: K accumulating (B*T, C_in) @ (C_in, C_out) dots ----
        h = x_ref[...]                                     # (BT, C_in) f32
        for taps in layer_meta:
            acc = None
            for shift, r0, r1 in taps:
                w_tap = w_ref[r0:r1, :]                    # static VMEM view
                part = jnp.dot(shifted(h, shift), w_tap,
                               preferred_element_type=jnp.float32)
                acc = part if acc is None else acc + part
            h = jnp.maximum(acc, 0.0)                      # ReLU; dropout = identity (eval)

        # ---- FC head: lane reduce over ALL rows (no row gathers), then a
        # lane-broadcast so the store is one unmasked, lane-dense slab. ----
        fcw = w_ref[fc_row:fc_row + 1, :]                  # (1, H)
        y = jnp.sum(h * fcw, axis=-1, keepdims=True) + fcb_ref[0]   # (BT, 1)
        out_ref[...] = jnp.broadcast_to(y, (BT, out_lanes))

    return tcn_kernel


def tcn_forward(x, conv_weights, fc_w, fc_b):
    """x: (B, T, C_in) f32, conv_weights[i]: (K, C_in, C_out),
    fc_w: (1, H), fc_b: (1,)  ->  (B, 1) f32."""
    batch, seq_len, c_in = x.shape
    hidden = conv_weights[0].shape[-1]

    # ---- host-side layout plumbing (no compute) ----
    x_flat = x.reshape(batch * seq_len, c_in)

    # Pack all live conv taps + fc weight into one (rows, hidden) slab.
    # Dead taps (shift >= T) are dropped entirely.  Every block start is a
    # multiple of 8 rows, so in-kernel slices stay sublane-aligned views.
    blocks, layer_meta, row = [], [], 0
    for layer, w in enumerate(conv_weights):               # w: (K, C_in, C_out)
        d = DILATIONS[layer]
        taps = []
        for j in range(KERNEL_SIZE):
            shift = (KERNEL_SIZE - 1 - j) * d
            if shift >= seq_len:
                continue                                   # tap only sees zero padding
            taps.append((shift, row, row + w.shape[1]))
            blocks.append(w[j])                            # (C_in, C_out)
            row += w.shape[1]
        layer_meta.append(taps)
    fc_row = row
    blocks.append(fc_w.reshape(1, hidden))
    w_slab = jnp.concatenate(blocks, axis=0)               # (fc_row + 1, hidden)

    out_lanes = 128                                        # lane-dense output slab
    kernel = make_tcn_kernel(batch, seq_len, layer_meta, fc_row, out_lanes)

    vmem = pl.BlockSpec(memory_space=pltpu.MemorySpace.VMEM)
    smem = pl.BlockSpec(memory_space=pltpu.MemorySpace.SMEM)

    y_slab = pl.pallas_call(
        kernel,
        out_shape=jax.ShapeDtypeStruct((batch * seq_len, out_lanes), jnp.float32),
        in_specs=[vmem, vmem, smem],
        out_specs=vmem,
    )(x_flat, w_slab, fc_b)

    # Row selection outside the kernel: last time step of each batch, lane 0.
    return y_slab[seq_len - 1::seq_len, 0:1]               # (B, 1)


def tcn_reference(x, conv_weights, fc_w, fc_b):
    """Pure-JAX reference (same semantics as the PyTorch forward, eval mode)."""
    T = x.shape[1]
    h = x
    for layer in range(NUM_LAYERS):
        d = DILATIONS[layer]
        W = conv_weights[layer]                            # (K, C_in, C_out)
        acc = 0.0
        for j in range(KERNEL_SIZE):
            shift = (KERNEL_SIZE - 1 - j) * d
            hs = jnp.pad(h, ((0, 0), (shift, 0), (0, 0)))[:, :T, :]
            acc = acc + jnp.einsum("btc,cd->btd", hs, W[j])
        h = jax.nn.relu(acc)
    last = h[:, -1, :]                                     # (B, H)
    return last @ fc_w.reshape(-1, 1) + fc_b.reshape(1, 1)


if __name__ == "__main__":
    key = jax.random.PRNGKey(0)
    keys = jax.random.split(key, NUM_LAYERS + 3)

    # Conv1d weights: PyTorch shape (C_out, C_in, K); stored here as (K, C_in, C_out).
    conv_weights = []
    c_in = INPUT_FEATURES
    for layer in range(NUM_LAYERS):
        w = 0.1 * jax.random.normal(
            keys[layer], (KERNEL_SIZE, c_in, HIDDEN_FEATURES), jnp.float32)
        conv_weights.append(w)
        c_in = HIDDEN_FEATURES

    # Linear(hidden_features, 1): weight (1, H) (PyTorch layout, lane-dense); bias (1,).
    fc_w = 0.1 * jax.random.normal(keys[NUM_LAYERS], (1, HIDDEN_FEATURES), jnp.float32)
    fc_b = 0.1 * jax.random.normal(keys[NUM_LAYERS + 1], (1,), jnp.float32)

    # Input: (B, T, F) — same layout the PyTorch forward() receives before its permute.
    x = jax.random.normal(
        keys[NUM_LAYERS + 2], (BATCH, TRAINING_SPAN, INPUT_FEATURES), jnp.float32)

    out = tcn_forward(x, conv_weights, fc_w, fc_b)
    out = jax.block_until_ready(out)

    ref = jax.block_until_ready(tcn_reference(x, conv_weights, fc_w, fc_b))
    np.testing.assert_allclose(np.asarray(out), np.asarray(ref), rtol=1e-4, atol=1e-5)

    print("KERNEL_OK")
</pallas_src>

<mosaic_0001>
module attributes {stable_mosaic.version = 11 : i64} {
  func.func @tcn_kernel(%arg0: memref<64x8xf32, #tpu.memory_space<vmem>>, %arg1: memref<377x32xf32, #tpu.memory_space<vmem>>, %arg2: memref<1xf32, #tpu.memory_space<smem>>, %arg3: memref<64x128xf32, #tpu.memory_space<vmem>>) attributes {dimension_semantics = [], scalar_prefetch = 0 : i64, scratch_operands = 0 : i64, tpu.core_type = #tpu.core_type<tc>} {
    %0 = tpu.iota {dimensions = array<i32: 0>} : vector<64x1xi32>
    %c32_i32 = arith.constant 32 : i32
    %c0_i32 = arith.constant 0 : i32
    %1 = arith.cmpi eq, %c32_i32, %c0_i32 : i32
    %c1_i32 = arith.constant 1 : i32
    %2 = arith.select %1, %c1_i32, %c32_i32 : i32
    %3 = vector.broadcast %2 : i32 to vector<64x1xi32>
    %4 = arith.remsi %0, %3 : vector<64x1xi32>
    %c0_i32_0 = arith.constant 0 : i32
    %5 = vector.broadcast %c0_i32_0 : i32 to vector<64x1xi32>
    %6 = arith.cmpi ne, %4, %5 : vector<64x1xi32>
    %c0_i32_1 = arith.constant 0 : i32
    %7 = vector.broadcast %c0_i32_1 : i32 to vector<64x1xi32>
    %8 = arith.cmpi slt, %4, %7 : vector<64x1xi32>
    %c0_i32_2 = arith.constant 0 : i32
    %9 = arith.cmpi slt, %2, %c0_i32_2 : i32
    %10 = vector.broadcast %9 : i1 to vector<64x1xi1>
    %11 = vector.broadcast %10 : vector<64x1xi1> to vector<64x1xi1>
    %12 = arith.xori %8, %11 : vector<64x1xi1>
    %13 = arith.andi %12, %6 : vector<64x1xi1>
    %14 = vector.broadcast %2 : i32 to vector<64x1xi32>
    %15 = arith.addi %4, %14 : vector<64x1xi32>
    %16 = arith.select %13, %15, %4 : vector<64x1xi1>, vector<64x1xi32>
    %c0 = arith.constant 0 : index
    %c0_3 = arith.constant 0 : index
    %17 = vector.load %arg0[%c0, %c0_3] : memref<64x8xf32, #tpu.memory_space<vmem>>, vector<64x8xf32>
    %c0_4 = arith.constant 0 : index
    %c0_5 = arith.constant 0 : index
    %18 = vector.load %arg1[%c0_4, %c0_5] : memref<377x32xf32, #tpu.memory_space<vmem>>, vector<8x32xf32>
    %c2_i32 = arith.constant 2 : i32
    %19 = tpu.dynamic_rotate %17 by %c2_i32 dim 0 : vector<64x8xf32>, i32 -> vector<64x8xf32>
    %c2_i32_6 = arith.constant 2 : i32
    %20 = vector.broadcast %c2_i32_6 : i32 to vector<64x1xi32>
    %21 = arith.cmpi slt, %16, %20 : vector<64x1xi32>
    %cst = arith.constant 0.000000e+00 : f32
    %22 = vector.shape_cast %21 : vector<64x1xi1> to vector<64x1xi1>
    %23 = vector.broadcast %22 : vector<64x1xi1> to vector<64x8xi1>
    %24 = vector.broadcast %cst : f32 to vector<64x8xf32>
    %25 = arith.select %23, %24, %19 : vector<64x8xi1>, vector<64x8xf32>
    %cst_7 = arith.constant dense<0.000000e+00> : vector<64x32xf32>
    %26 = tpu.matmul %25, %18, %cst_7 {dimension_numbers = #tpu.dot_dimension_numbers<[1], [0], [0], [1], [0, 0, 1, 1], [], []>} : vector<64x8xf32>, vector<8x32xf32>, vector<64x32xf32> -> vector<64x32xf32>
    %c8 = arith.constant 8 : index
    %c0_8 = arith.constant 0 : index
    %27 = vector.load %arg1[%c8, %c0_8] : memref<377x32xf32, #tpu.memory_space<vmem>>, vector<8x32xf32>
    %c1_i32_9 = arith.constant 1 : i32
    %28 = tpu.dynamic_rotate %17 by %c1_i32_9 dim 0 : vector<64x8xf32>, i32 -> vector<64x8xf32>
    %c1_i32_10 = arith.constant 1 : i32
    %29 = vector.broadcast %c1_i32_10 : i32 to vector<64x1xi32>
    %30 = arith.cmpi slt, %16, %29 : vector<64x1xi32>
    %cst_11 = arith.constant 0.000000e+00 : f32
    %31 = vector.shape_cast %30 : vector<64x1xi1> to vector<64x1xi1>
    %32 = vector.broadcast %31 : vector<64x1xi1> to vector<64x8xi1>
    %33 = vector.broadcast %cst_11 : f32 to vector<64x8xf32>
    %34 = arith.select %32, %33, %28 : vector<64x8xi1>, vector<64x8xf32>
    %cst_12 = arith.constant dense<0.000000e+00> : vector<64x32xf32>
    %35 = tpu.matmul %34, %27, %cst_12 {dimension_numbers = #tpu.dot_dimension_numbers<[1], [0], [0], [1], [0, 0, 1, 1], [], []>} : vector<64x8xf32>, vector<8x32xf32>, vector<64x32xf32> -> vector<64x32xf32>
    %36 = arith.addf %26, %35 : vector<64x32xf32>
    %c16 = arith.constant 16 : index
    %c0_13 = arith.constant 0 : index
    %37 = vector.load %arg1[%c16, %c0_13] : memref<377x32xf32, #tpu.memory_space<vmem>>, vector<8x32xf32>
    %cst_14 = arith.constant dense<0.000000e+00> : vector<64x32xf32>
    %38 = tpu.matmul %17, %37, %cst_14 {dimension_numbers = #tpu.dot_dimension_numbers<[1], [0], [0], [1], [0, 0, 1, 1], [], []>} : vector<64x8xf32>, vector<8x32xf32>, vector<64x32xf32> -> vector<64x32xf32>
    %39 = arith.addf %36, %38 : vector<64x32xf32>
    %cst_15 = arith.constant 0.000000e+00 : f32
    %40 = vector.broadcast %cst_15 : f32 to vector<64x32xf32>
    %41 = arith.maximumf %39, %40 : vector<64x32xf32>
    %c24 = arith.constant 24 : index
    %c0_16 = arith.constant 0 : index
    %42 = vector.load %arg1[%c24, %c0_16] : memref<377x32xf32, #tpu.memory_space<vmem>>, vector<32x32xf32>
    %c4_i32 = arith.constant 4 : i32
    %43 = tpu.dynamic_rotate %41 by %c4_i32 dim 0 : vector<64x32xf32>, i32 -> vector<64x32xf32>
    %c4_i32_17 = arith.constant 4 : i32
    %44 = vector.broadcast %c4_i32_17 : i32 to vector<64x1xi32>
    %45 = arith.cmpi slt, %16, %44 : vector<64x1xi32>
    %cst_18 = arith.constant 0.000000e+00 : f32
    %46 = vector.shape_cast %45 : vector<64x1xi1> to vector<64x1xi1>
    %47 = vector.broadcast %46 : vector<64x1xi1> to vector<64x32xi1>
    %48 = vector.broadcast %cst_18 : f32 to vector<64x32xf32>
    %49 = arith.select %47, %48, %43 : vector<64x32xi1>, vector<64x32xf32>
    %cst_19 = arith.constant dense<0.000000e+00> : vector<64x32xf32>
    %50 = tpu.matmul %49, %42, %cst_19 {dimension_numbers = #tpu.dot_dimension_numbers<[1], [0], [0], [1], [0, 0, 1, 1], [], []>} : vector<64x32xf32>, vector<32x32xf32>, vector<64x32xf32> -> vector<64x32xf32>
    %c56 = arith.constant 56 : index
    %c0_20 = arith.constant 0 : index
    %51 = vector.load %arg1[%c56, %c0_20] : memref<377x32xf32, #tpu.memory_space<vmem>>, vector<32x32xf32>
    %c2_i32_21 = arith.constant 2 : i32
    %52 = tpu.dynamic_rotate %41 by %c2_i32_21 dim 0 : vector<64x32xf32>, i32 -> vector<64x32xf32>
    %c2_i32_22 = arith.constant 2 : i32
    %53 = vector.broadcast %c2_i32_22 : i32 to vector<64x1xi32>
    %54 = arith.cmpi slt, %16, %53 : vector<64x1xi32>
    %cst_23 = arith.constant 0.000000e+00 : f32
    %55 = vector.shape_cast %54 : vector<64x1xi1> to vector<64x1xi1>
    %56 = vector.broadcast %55 : vector<64x1xi1> to vector<64x32xi1>
    %57 = vector.broadcast %cst_23 : f32 to vector<64x32xf32>
    %58 = arith.select %56, %57, %52 : vector<64x32xi1>, vector<64x32xf32>
    %cst_24 = arith.constant dense<0.000000e+00> : vector<64x32xf32>
    %59 = tpu.matmul %58, %51, %cst_24 {dimension_numbers = #tpu.dot_dimension_numbers<[1], [0], [0], [1], [0, 0, 1, 1], [], []>} : vector<64x32xf32>, vector<32x32xf32>, vector<64x32xf32> -> vector<64x32xf32>
    %60 = arith.addf %50, %59 : vector<64x32xf32>
    %c88 = arith.constant 88 : index
    %c0_25 = arith.constant 0 : index
    %61 = vector.load %arg1[%c88, %c0_25] : memref<377x32xf32, #tpu.memory_space<vmem>>, vector<32x32xf32>
    %cst_26 = arith.constant dense<0.000000e+00> : vector<64x32xf32>
    %62 = tpu.matmul %41, %61, %cst_26 {dimension_numbers = #tpu.dot_dimension_numbers<[1], [0], [0], [1], [0, 0, 1, 1], [], []>} : vector<64x32xf32>, vector<32x32xf32>, vector<64x32xf32> -> vector<64x32xf32>
    %63 = arith.addf %60, %62 : vector<64x32xf32>
    %cst_27 = arith.constant 0.000000e+00 : f32
    %64 = vector.broadcast %cst_27 : f32 to vector<64x32xf32>
    %65 = arith.maximumf %63, %64 : vector<64x32xf32>
    %c120 = arith.constant 120 : index
    %c0_28 = arith.constant 0 : index
    %66 = vector.load %arg1[%c120, %c0_28] : memref<377x32xf32, #tpu.memory_space<vmem>>, vector<32x32xf32>
    %c8_i32 = arith.constant 8 : i32
    %67 = tpu.dynamic_rotate %65 by %c8_i32 dim 0 : vector<64x32xf32>, i32 -> vector<64x32xf32>
    %c8_i32_29 = arith.constant 8 : i32
    %68 = vector.broadcast %c8_i32_29 : i32 to vector<64x1xi32>
    %69 = arith.cmpi slt, %16, %68 : vector<64x1xi32>
    %cst_30 = arith.constant 0.000000e+00 : f32
    %70 = vector.shape_cast %69 : vector<64x1xi1> to vector<64x1xi1>
    %71 = vector.broadcast %70 : vector<64x1xi1> to vector<64x32xi1>
    %72 = vector.broadcast %cst_30 : f32 to vector<64x32xf32>
    %73 = arith.select %71, %72, %67 : vector<64x32xi1>, vector<64x32xf32>
    %cst_31 = arith.constant dense<0.000000e+00> : vector<64x32xf32>
    %74 = tpu.matmul %73, %66, %cst_31 {dimension_numbers = #tpu.dot_dimension_numbers<[1], [0], [0], [1], [0, 0, 1, 1], [], []>} : vector<64x32xf32>, vector<32x32xf32>, vector<64x32xf32> -> vector<64x32xf32>
    %c152 = arith.constant 152 : index
    %c0_32 = arith.constant 0 : index
    %75 = vector.load %arg1[%c152, %c0_32] : memref<377x32xf32, #tpu.memory_space<vmem>>, vector<32x32xf32>
    %c4_i32_33 = arith.constant 4 : i32
    %76 = tpu.dynamic_rotate %65 by %c4_i32_33 dim 0 : vector<64x32xf32>, i32 -> vector<64x32xf32>
    %c4_i32_34 = arith.constant 4 : i32
    %77 = vector.broadcast %c4_i32_34 : i32 to vector<64x1xi32>
    %78 = arith.cmpi slt, %16, %77 : vector<64x1xi32>
    %cst_35 = arith.constant 0.000000e+00 : f32
    %79 = vector.shape_cast %78 : vector<64x1xi1> to vector<64x1xi1>
    %80 = vector.broadcast %79 : vector<64x1xi1> to vector<64x32xi1>
    %81 = vector.broadcast %cst_35 : f32 to vector<64x32xf32>
    %82 = arith.select %80, %81, %76 : vector<64x32xi1>, vector<64x32xf32>
    %cst_36 = arith.constant dense<0.000000e+00> : vector<64x32xf32>
    %83 = tpu.matmul %82, %75, %cst_36 {dimension_numbers = #tpu.dot_dimension_numbers<[1], [0], [0], [1], [0, 0, 1, 1], [], []>} : vector<64x32xf32>, vector<32x32xf32>, vector<64x32xf32> -> vector<64x32xf32>
    %84 = arith.addf %74, %83 : vector<64x32xf32>
    %c184 = arith.constant 184 : index
    %c0_37 = arith.constant 0 : index
    %85 = vector.load %arg1[%c184, %c0_37] : memref<377x32xf32, #tpu.memory_space<vmem>>, vector<32x32xf32>
    %cst_38 = arith.constant dense<0.000000e+00> : vector<64x32xf32>
    %86 = tpu.matmul %65, %85, %cst_38 {dimension_numbers = #tpu.dot_dimension_numbers<[1], [0], [0], [1], [0, 0, 1, 1], [], []>} : vector<64x32xf32>, vector<32x32xf32>, vector<64x32xf32> -> vector<64x32xf32>
    %87 = arith.addf %84, %86 : vector<64x32xf32>
    %cst_39 = arith.constant 0.000000e+00 : f32
    %88 = vector.broadcast %cst_39 : f32 to vector<64x32xf32>
    %89 = arith.maximumf %87, %88 : vector<64x32xf32>
    %c216 = arith.constant 216 : index
    %c0_40 = arith.constant 0 : index
    %90 = vector.load %arg1[%c216, %c0_40] : memref<377x32xf32, #tpu.memory_space<vmem>>, vector<32x32xf32>
    %c16_i32 = arith.constant 16 : i32
    %91 = tpu.dynamic_rotate %89 by %c16_i32 dim 0 : vector<64x32xf32>, i32 -> vector<64x32xf32>
    %c16_i32_41 = arith.constant 16 : i32
    %92 = vector.broadcast %c16_i32_41 : i32 to vector<64x1xi32>
    %93 = arith.cmpi slt, %16, %92 : vector<64x1xi32>
    %cst_42 = arith.constant 0.000000e+00 : f32
    %94 = vector.shape_cast %93 : vector<64x1xi1> to vector<64x1xi1>
    %95 = vector.broadcast %94 : vector<64x1xi1> to vector<64x32xi1>
    %96 = vector.broadcast %cst_42 : f32 to vector<64x32xf32>
    %97 = arith.select %95, %96, %91 : vector<64x32xi1>, vector<64x32xf32>
    %cst_43 = arith.constant dense<0.000000e+00> : vector<64x32xf32>
    %98 = tpu.matmul %97, %90, %cst_43 {dimension_numbers = #tpu.dot_dimension_numbers<[1], [0], [0], [1], [0, 0, 1, 1], [], []>} : vector<64x32xf32>, vector<32x32xf32>, vector<64x32xf32> -> vector<64x32xf32>
    %c248 = arith.constant 248 : index
    %c0_44 = arith.constant 0 : index
    %99 = vector.load %arg1[%c248, %c0_44] : memref<377x32xf32, #tpu.memory_space<vmem>>, vector<32x32xf32>
    %c8_i32_45 = arith.constant 8 : i32
    %100 = tpu.dynamic_rotate %89 by %c8_i32_45 dim 0 : vector<64x32xf32>, i32 -> vector<64x32xf32>
    %c8_i32_46 = arith.constant 8 : i32
    %101 = vector.broadcast %c8_i32_46 : i32 to vector<64x1xi32>
    %102 = arith.cmpi slt, %16, %101 : vector<64x1xi32>
    %cst_47 = arith.constant 0.000000e+00 : f32
    %103 = vector.shape_cast %102 : vector<64x1xi1> to vector<64x1xi1>
    %104 = vector.broadcast %103 : vector<64x1xi1> to vector<64x32xi1>
    %105 = vector.broadcast %cst_47 : f32 to vector<64x32xf32>
    %106 = arith.select %104, %105, %100 : vector<64x32xi1>, vector<64x32xf32>
    %cst_48 = arith.constant dense<0.000000e+00> : vector<64x32xf32>
    %107 = tpu.matmul %106, %99, %cst_48 {dimension_numbers = #tpu.dot_dimension_numbers<[1], [0], [0], [1], [0, 0, 1, 1], [], []>} : vector<64x32xf32>, vector<32x32xf32>, vector<64x32xf32> -> vector<64x32xf32>
    %108 = arith.addf %98, %107 : vector<64x32xf32>
    %c280 = arith.constant 280 : index
    %c0_49 = arith.constant 0 : index
    %109 = vector.load %arg1[%c280, %c0_49] : memref<377x32xf32, #tpu.memory_space<vmem>>, vector<32x32xf32>
    %cst_50 = arith.constant dense<0.000000e+00> : vector<64x32xf32>
    %110 = tpu.matmul %89, %109, %cst_50 {dimension_numbers = #tpu.dot_dimension_numbers<[1], [0], [0], [1], [0, 0, 1, 1], [], []>} : vector<64x32xf32>, vector<32x32xf32>, vector<64x32xf32> -> vector<64x32xf32>
    %111 = arith.addf %108, %110 : vector<64x32xf32>
    %cst_51 = arith.constant 0.000000e+00 : f32
    %112 = vector.broadcast %cst_51 : f32 to vector<64x32xf32>
    %113 = arith.maximumf %111, %112 : vector<64x32xf32>
    %c312 = arith.constant 312 : index
    %c0_52 = arith.constant 0 : index
    %114 = vector.load %arg1[%c312, %c0_52] : memref<377x32xf32, #tpu.memory_space<vmem>>, vector<32x32xf32>
    %c16_i32_53 = arith.constant 16 : i32
    %115 = tpu.dynamic_rotate %113 by %c16_i32_53 dim 0 : vector<64x32xf32>, i32 -> vector<64x32xf32>
    %c16_i32_54 = arith.constant 16 : i32
    %116 = vector.broadcast %c16_i32_54 : i32 to vector<64x1xi32>
    %117 = arith.cmpi slt, %16, %116 : vector<64x1xi32>
    %cst_55 = arith.constant 0.000000e+00 : f32
    %118 = vector.shape_cast %117 : vector<64x1xi1> to vector<64x1xi1>
    %119 = vector.broadcast %118 : vector<64x1xi1> to vector<64x32xi1>
    %120 = vector.broadcast %cst_55 : f32 to vector<64x32xf32>
    %121 = arith.select %119, %120, %115 : vector<64x32xi1>, vector<64x32xf32>
    %cst_56 = arith.constant dense<0.000000e+00> : vector<64x32xf32>
    %122 = tpu.matmul %121, %114, %cst_56 {dimension_numbers = #tpu.dot_dimension_numbers<[1], [0], [0], [1], [0, 0, 1, 1], [], []>} : vector<64x32xf32>, vector<32x32xf32>, vector<64x32xf32> -> vector<64x32xf32>
    %c344 = arith.constant 344 : index
    %c0_57 = arith.constant 0 : index
    %123 = vector.load %arg1[%c344, %c0_57] : memref<377x32xf32, #tpu.memory_space<vmem>>, vector<32x32xf32>
    %cst_58 = arith.constant dense<0.000000e+00> : vector<64x32xf32>
    %124 = tpu.matmul %113, %123, %cst_58 {dimension_numbers = #tpu.dot_dimension_numbers<[1], [0], [0], [1], [0, 0, 1, 1], [], []>} : vector<64x32xf32>, vector<32x32xf32>, vector<64x32xf32> -> vector<64x32xf32>
    %125 = arith.addf %122, %124 : vector<64x32xf32>
    %cst_59 = arith.constant 0.000000e+00 : f32
    %126 = vector.broadcast %cst_59 : f32 to vector<64x32xf32>
    %127 = arith.maximumf %125, %126 : vector<64x32xf32>
    %c376 = arith.constant 376 : index
    %c0_60 = arith.constant 0 : index
    %128 = vector.load %arg1[%c376, %c0_60] : memref<377x32xf32, #tpu.memory_space<vmem>>, vector<1x32xf32>
    %129 = vector.broadcast %128 : vector<1x32xf32> to vector<64x32xf32>
    %130 = arith.mulf %127, %129 : vector<64x32xf32>
    %cst_61 = arith.constant dense<0.000000e+00> : vector<64xf32>
    %131 = vector.multi_reduction <add>, %130, %cst_61 [1] : vector<64x32xf32> to vector<64xf32>
    %132 = vector.shape_cast %131 : vector<64xf32> to vector<64x1xf32>
    %c0_62 = arith.constant 0 : index
    %133 = memref.load %arg2[%c0_62] : memref<1xf32, #tpu.memory_space<smem>>
    %134 = vector.broadcast %133 : f32 to vector<64x1xf32>
    %135 = arith.addf %132, %134 : vector<64x1xf32>
    %136 = vector.shape_cast %135 : vector<64x1xf32> to vector<64x1xf32>
    %137 = vector.broadcast %136 : vector<64x1xf32> to vector<64x128xf32>
    %c0_63 = arith.constant 0 : index
    %c0_64 = arith.constant 0 : index
    %138 = vector.load %arg3[%c0_63, %c0_64] : memref<64x128xf32, #tpu.memory_space<vmem>>, vector<64x128xf32>
    tpu.vector_store %arg3[%c0_63, %c0_64], %137 {strides = array<i32>} : memref<64x128xf32, #tpu.memory_space<vmem>>, vector<64x128xf32>,
    return
  }
}

</mosaic_0001>

<llo_original>
// kernel: tpu_custom_call.1
$region0: #{tpu_custom_call.1}
  #allocation0 [shape = 'u32[]', space=smem, size = 0x4, offset = 0x4, fixed_abs, tag = 'smem constant byte address 0x4 - core index']
  #allocation1 [shape = 'u32[144,128]{1,0:T(1,128)}', space=vmem, size = 0x12000, scoped, tag = 'internal scratch']
  #allocation2 [shape = 'f32[1]{0:T(128)S(6)}', space=smem, size = 0x200, scoped, tag = 'scoped memory for tpu_custom_call.1']
  %s0 = inlined_call_operand.vmem [shape: f32[64,8], index: 0, kind: input, shape index: {}]
  %s1 = inlined_call_operand.vmem [shape: f32[377,32], index: 1, kind: input, shape index: {}]
  %s2 = inlined_call_operand.<no memory space> [shape: f32[1], index: 2, kind: input, shape index: {}]
  %s3 = inlined_call_operand.hbm [shape: f32[64,128], index: 3, kind: output, shape index: {}]
  %s4 = sld [smem:[#allocation0]]
  $region22: #{tpu_custom_call.1} parent=0
    _
  %s6 = ssub.s32 1, %s4
  %s7 = scalar_select 0, %s6, %s4
  %8 = sst [smem:[#allocation2]] %s2
  $region1: #{tpu_custom_call.1} parent=0
    #allocation3 [shape = 'u8[32768]{0}', space=vmem, size = 0x8000, scoped, tag = 'output window, operand 0, single buffered']
    #allocation4 [shape = 's32[1]{0}', space=sflag, size = 0x4, scoped, tag = 'scoped memory for tpu_custom_call.1']
    %9 = vsyncpa [#allocation4], 0
    // Predicated region
    $region2: #{tpu_custom_call.1} parent=1 // pred_check
      _
    $region3: #{tpu_custom_call.1} parent=1 // pred_check_branch
      %11 = sbr.rel (0) target = $region5
    $region4: #{tpu_custom_call.1} parent=1 // pred_region
      _
    $region5: #{tpu_custom_call.1} parent=1 // pred_fallthru
      _
    // Predicated region
    $region6: #{tpu_custom_call.1} parent=1 // pred_check
      _
    $region7: #{tpu_custom_call.1} parent=1 // pred_check_branch
      %13 = sbr.rel (0) target = $region9
    $region8: #{tpu_custom_call.1} parent=1 // pred_region
      _
    $region9: #{tpu_custom_call.1} parent=1 // pred_fallthru
      _
    // Predicated region
    $region10: #{tpu_custom_call.1} parent=1 // pred_check
      _
    $region11: #{tpu_custom_call.1} parent=1 // pred_check_branch
      %15 = sbr.rel (0) target = $region13
    $region12: #{tpu_custom_call.1} parent=1 // pred_region
      _
    $region13: #{tpu_custom_call.1} parent=1 // pred_fallthru
      _
    %v16 = vlaneseq
    %v17 = vshrl.u32 %v16, 7
    %v18 = vadd.s32 %v17, 8
    %v19 = vadd.s32 %v17, 16
    %v20 = vadd.s32 %v17, 24
    %v21 = vadd.s32 %v17, 32
    %v22 = vadd.s32 %v17, 40
    %v23 = vadd.s32 %v17, 48
    %v24 = vadd.s32 %v17, 56
    %vm25 = vcmp.lt.s32.totalorder %v17, 0
    %v26 = vsub.s32 0, %v17
    %v27 = vsel %vm25, %v26, %v17
    %v28 = vshrl.u32 %v27, 5
    %v29 = vand.u32 %v27, 31
    %v30 = vsub.s32 0, %v29
    %v31 = vsel %vm25, %v30, %v29
    %vm32 = vcmp.lt.s32.totalorder %v18, 0
    %v33 = vsub.s32 0, %v18
    %v34 = vsel %vm32, %v33, %v18
    %v35 = vshrl.u32 %v34, 5
    %v36 = vand.u32 %v34, 31
    %v37 = vsub.s32 0, %v36
    %v38 = vsel %vm32, %v37, %v36
    %vm39 = vcmp.lt.s32.totalorder %v19, 0
    %v40 = vsub.s32 0, %v19
    %v41 = vsel %vm39, %v40, %v19
    %v42 = vshrl.u32 %v41, 5
    %v43 = vand.u32 %v41, 31
    %v44 = vsub.s32 0, %v43
    %v45 = vsel %vm39, %v44, %v43
    %vm46 = vcmp.lt.s32.totalorder %v20, 0
    %v47 = vsub.s32 0, %v20
    %v48 = vsel %vm46, %v47, %v20
    %v49 = vshrl.u32 %v48, 5
    %v50 = vand.u32 %v48, 31
    %v51 = vsub.s32 0, %v50
    %v52 = vsel %vm46, %v51, %v50
    %vm53 = vcmp.lt.s32.totalorder %v21, 0
    %v54 = vsub.s32 0, %v21
    %v55 = vsel %vm53, %v54, %v21
    %v56 = vshrl.u32 %v55, 5
    %v57 = vand.u32 %v55, 31
    %v58 = vsub.s32 0, %v57
    %v59 = vsel %vm53, %v58, %v57
    %vm60 = vcmp.lt.s32.totalorder %v22, 0
    %v61 = vsub.s32 0, %v22
    %v62 = vsel %vm60, %v61, %v22
    %v63 = vshrl.u32 %v62, 5
    %v64 = vand.u32 %v62, 31
    %v65 = vsub.s32 0, %v64
    %v66 = vsel %vm60, %v65, %v64
    %vm67 = vcmp.lt.s32.totalorder %v23, 0
    %v68 = vsub.s32 0, %v23
    %v69 = vsel %vm67, %v68, %v23
    %v70 = vshrl.u32 %v69, 5
    %v71 = vand.u32 %v69, 31
    %v72 = vsub.s32 0, %v71
    %v73 = vsel %vm67, %v72, %v71
    %vm74 = vcmp.lt.s32.totalorder %v24, 0
    %v75 = vsub.s32 0, %v24
    %v76 = vsel %vm74, %v75, %v24
    %v77 = vshrl.u32 %v76, 5
    %v78 = vand.u32 %v76, 31
    %v79 = vsub.s32 0, %v78
    %v80 = vsel %vm74, %v79, %v78
    %vm81 = vcmp.ne.s32.totalorder %v31, 0
    %vm82 = vcmp.ne.s32.totalorder %v38, 0
    %vm83 = vcmp.ne.s32.totalorder %v45, 0
    %vm84 = vcmp.ne.s32.totalorder %v52, 0
    %vm85 = vcmp.ne.s32.totalorder %v59, 0
    %vm86 = vcmp.ne.s32.totalorder %v66, 0
    %vm87 = vcmp.ne.s32.totalorder %v73, 0
    %vm88 = vcmp.ne.s32.totalorder %v80, 0
    %vm89 = vcmp.lt.s32.totalorder %v31, 0
    %vm90 = vcmp.lt.s32.totalorder %v38, 0
    %vm91 = vcmp.lt.s32.totalorder %v45, 0
    %vm92 = vcmp.lt.s32.totalorder %v52, 0
    %vm93 = vcmp.lt.s32.totalorder %v59, 0
    %vm94 = vcmp.lt.s32.totalorder %v66, 0
    %vm95 = vcmp.lt.s32.totalorder %v73, 0
    %vm96 = vcmp.lt.s32.totalorder %v80, 0
    %vm97 = vmand %vm89, %vm81
    %vm98 = vmand %vm90, %vm82
    %vm99 = vmand %vm91, %vm83
    %vm100 = vmand %vm92, %vm84
    %vm101 = vmand %vm93, %vm85
    %vm102 = vmand %vm94, %vm86
    %vm103 = vmand %vm95, %vm87
    %vm104 = vmand %vm96, %vm88
    %v105 = vadd.s32 %v31, 32
    %v106 = vadd.s32 %v38, 32
    %v107 = vadd.s32 %v45, 32
    %v108 = vadd.s32 %v52, 32
    %v109 = vadd.s32 %v59, 32
    %v110 = vadd.s32 %v66, 32
    %v111 = vadd.s32 %v73, 32
    %v112 = vadd.s32 %v80, 32
    %v113 = vsel %vm97, %v105, %v31
    %v114 = vsel %vm98, %v106, %v38
    %v115 = vsel %vm99, %v107, %v45
    %v116 = vsel %vm100, %v108, %v52
    %v117 = vsel %vm101, %v109, %v59
    %v118 = vsel %vm102, %v110, %v66
    %v119 = vsel %vm103, %v111, %v73
    %v120 = vsel %vm104, %v112, %v80
    %v121 = vld [vmem:[%s0] sm:$0xff]
    %v122 = vld [vmem:[%s0 + $0x8] sm:$0xff]
    %v123 = vld [vmem:[%s0 + $0x10] sm:$0xff]
    %v124 = vld [vmem:[%s0 + $0x18] sm:$0xff]
    %v125 = vld [vmem:[%s0 + $0x20] sm:$0xff]
    %v126 = vld [vmem:[%s0 + $0x28] sm:$0xff]
    %v127 = vld [vmem:[%s0 + $0x30] sm:$0xff]
    %v128 = vld [vmem:[%s0 + $0x38] sm:$0xff]
    %v129 = vld [vmem:[%s1] sm:$0xff]
    %v130 = vrot.slane %v121, 6
    %v131 = vrot.slane %v122, 6
    %v132 = vrot.slane %v123, 6
    %v133 = vrot.slane %v124, 6
    %v134 = vrot.slane %v125, 6
    %v135 = vrot.slane %v126, 6
    %v136 = vrot.slane %v127, 6
    %v137 = vrot.slane %v128, 6
    %vm138 = vcmp.lt.s32.totalorder %v17, 2
    %v139 = vsel %vm138, %v136, %v137
    %v140 = vsel %vm138, %v135, %v136
    %v141 = vsel %vm138, %v134, %v135
    %v142 = vsel %vm138, %v133, %v134
    %v143 = vsel %vm138, %v132, %v133
    %v144 = vsel %vm138, %v131, %v132
    %v145 = vsel %vm138, %v130, %v131
    %v146 = vsel %vm138, %v137, %v130
    %vm147 = vcmp.lt.s32.totalorder %v113, 2
    %vm148 = vcmp.lt.s32.totalorder %v114, 2
    %vm149 = vcmp.lt.s32.totalorder %v115, 2
    %vm150 = vcmp.lt.s32.totalorder %v116, 2
    %vm151 = vcmp.lt.s32.totalorder %v117, 2
    %vm152 = vcmp.lt.s32.totalorder %v118, 2
    %vm153 = vcmp.lt.s32.totalorder %v119, 2
    %vm154 = vcmp.lt.s32.totalorder %v120, 2
    %v155 = vsel %vm147, 1, 0
    %v156 = vsel %vm148, 1, 0
    %v157 = vsel %vm149, 1, 0
    %v158 = vsel %vm150, 1, 0
    %v159 = vsel %vm151, 1, 0
    %v160 = vsel %vm152, 1, 0
    %v161 = vsel %vm153, 1, 0
    %v162 = vsel %vm154, 1, 0
    %vm163 = vcmp.eq.s32.totalorder %v155, 1
    %vm164 = vcmp.eq.s32.totalorder %v156, 1
    %vm165 = vcmp.eq.s32.totalorder %v157, 1
    %vm166 = vcmp.eq.s32.totalorder %v158, 1
    %vm167 = vcmp.eq.s32.totalorder %v159, 1
    %vm168 = vcmp.eq.s32.totalorder %v160, 1
    %vm169 = vcmp.eq.s32.totalorder %v161, 1
    %vm170 = vcmp.eq.s32.totalorder %v162, 1
    %v171 = vsel %vm163, 0.0, %v146
    %v172 = vsel %vm164, 0.0, %v145
    %v173 = vsel %vm165, 0.0, %v144
    %v174 = vsel %vm166, 0.0, %v143
    %v175 = vsel %vm167, 0.0, %v142
    %v176 = vsel %vm168, 0.0, %v141
    %v177 = vsel %vm169, 0.0, %v140
    %v178 = vsel %vm170, 0.0, %v139
    %v179 = vld [vmem:[%s1 + $0x8] sm:$0xff]
    %v180 = vrot.slane %v121, 7
    %v181 = vrot.slane %v122, 7
    %v182 = vrot.slane %v123, 7
    %v183 = vrot.slane %v124, 7
    %v184 = vrot.slane %v125, 7
    %v185 = vrot.slane %v126, 7
    %v186 = vrot.slane %v127, 7
    %v187 = vrot.slane %v128, 7
    %vm188 = vcmp.lt.s32.totalorder %v17, 1
    %v189 = vsel %vm188, %v186, %v187
    %v190 = vsel %vm188, %v185, %v186
    %v191 = vsel %vm188, %v184, %v185
    %v192 = vsel %vm188, %v183, %v184
    %v193 = vsel %vm188, %v182, %v183
    %v194 = vsel %vm188, %v181, %v182
    %v195 = vsel %vm188, %v180, %v181
    %v196 = vsel %vm188, %v187, %v180
    %vm197 = vcmp.lt.s32.totalorder %v113, 1
    %vm198 = vcmp.lt.s32.totalorder %v114, 1
    %vm199 = vcmp.lt.s32.totalorder %v115, 1
    %vm200 = vcmp.lt.s32.totalorder %v116, 1
    %vm201 = vcmp.lt.s32.totalorder %v117, 1
    %vm202 = vcmp.lt.s32.totalorder %v118, 1
    %vm203 = vcmp.lt.s32.totalorder %v119, 1
    %vm204 = vcmp.lt.s32.totalorder %v120, 1
    %v205 = vsel %vm197, 1, 0
    %v206 = vsel %vm198, 1, 0
    %v207 = vsel %vm199, 1, 0
    %v208 = vsel %vm200, 1, 0
    %v209 = vsel %vm201, 1, 0
    %v210 = vsel %vm202, 1, 0
    %v211 = vsel %vm203, 1, 0
    %v212 = vsel %vm204, 1, 0
    %vm213 = vcmp.eq.s32.totalorder %v205, 1
    %vm214 = vcmp.eq.s32.totalorder %v206, 1
    %vm215 = vcmp.eq.s32.totalorder %v207, 1
    %vm216 = vcmp.eq.s32.totalorder %v208, 1
    %vm217 = vcmp.eq.s32.totalorder %v209, 1
    %vm218 = vcmp.eq.s32.totalorder %v210, 1
    %vm219 = vcmp.eq.s32.totalorder %v211, 1
    %vm220 = vcmp.eq.s32.totalorder %v212, 1
    %v221 = vsel %vm213, 0.0, %v196
    %v222 = vsel %vm214, 0.0, %v195
    %v223 = vsel %vm215, 0.0, %v194
    %v224 = vsel %vm216, 0.0, %v193
    %v225 = vsel %vm217, 0.0, %v192
    %v226 = vsel %vm218, 0.0, %v191
    %v227 = vsel %vm219, 0.0, %v190
    %v228 = vsel %vm220, 0.0, %v189
    %vm229 = vcmask 64512
    %v231 = vsel %vm229, %v221, 0
    %v234 = vsel %vm229, %v222, 0
    %v237 = vsel %vm229, %v223, 0
    %v240 = vsel %vm229, %v224, 0
    %v243 = vsel %vm229, %v225, 0
    %v246 = vsel %vm229, %v226, 0
    %v249 = vsel %vm229, %v227, 0
    %v252 = vsel %vm229, %v228, 0
    %254 = vmatprep.subr.mxu0 0.0
    %255 = vmatpush1.msra.mxu0 %v179
    %256 = vmatprep.subr.mxu0 0.0
    %257 = vmatpush1.msra.mxu0 0.0
    %258 = vmatprep.subr.mxu0 0.0
    %259 = vmatpush1.msra.mxu0 0.0
    %260 = vmatprep.subr.mxu0 0.0
    %261 = vmatpush1.msra.mxu0 0.0
    %262 = vmatprep.subr.mxu0 0.0
    %263 = vmatpush1.msra.mxu0 0.0
    %264 = vmatprep.subr.mxu0 0.0
    %265 = vmatpush1.msra.mxu0 0.0
    %266 = vmatprep.subr.mxu0 0.0
    %267 = vmatpush1.msra.mxu0 0.0
    %268 = vmatprep.subr.mxu0 0.0
    %269 = vmatpush1.msra.mxu0 0.0
    %270 = vmatprep.subr.mxu0 0.0
    %271 = vmatpush1.msra.mxu0 0.0
    %272 = vmatprep.subr.mxu0 0.0
    %273 = vmatpush1.msra.mxu0 0.0
    %274 = vmatprep.subr.mxu0 0.0
    %275 = vmatpush1.msra.mxu0 0.0
    %276 = vmatprep.subr.mxu0 0.0
    %277 = vmatpush1.msra.mxu0 0.0
    %278 = vmatprep.subr.mxu0 0.0
    %279 = vmatpush1.msra.mxu0 0.0
    %280 = vmatprep.subr.mxu0 0.0
    %281 = vmatpush1.msra.mxu0 0.0
    %282 = vmatprep.subr.mxu0 0.0
    %283 = vmatpush1.msra.mxu0 0.0
    %284 = vmatprep.subr.mxu0 0.0
    %285 = vmatpush1.msra.mxu0 0.0
    %286 = vmatprep.subr.mxu0 0.0
    %287 = vmatpush1.msra.mxu0 0.0
    %288 = vmatprep.subr.mxu0 0.0
    %289 = vmatpush1.msra.mxu0 0.0
    %290 = vmatprep.subr.mxu0 0.0
    %291 = vmatpush1.msra.mxu0 0.0
    %292 = vmatprep.subr.mxu0 0.0
    %293 = vmatpush1.msra.mxu0 0.0
    %294 = vmatprep.subr.mxu0 0.0
    %295 = vmatpush1.msra.mxu0 0.0
    %296 = vmatprep.subr.mxu0 0.0
    %297 = vmatpush1.msra.mxu0 0.0
    %298 = vmatprep.subr.mxu0 0.0
    %299 = vmatpush1.msra.mxu0 0.0
    %300 = vmatprep.subr.mxu0 0.0
    %301 = vmatpush1.msra.mxu0 0.0
    %302 = vmatprep.subr.mxu0 0.0
    %303 = vmatpush1.msra.mxu0 0.0
    %304 = vmatprep.subr.mxu0 0.0
    %305 = vmatpush1.msra.mxu0 0.0
    %306 = vmatprep.subr.mxu0 0.0
    %307 = vmatpush1.msra.mxu0 0.0
    %308 = vmatprep.subr.mxu0 0.0
    %309 = vmatpush1.msra.mxu0 0.0
    %310 = vmatprep.subr.mxu0 0.0
    %311 = vmatpush1.msra.mxu0 0.0
    %312 = vmatprep.subr.mxu0 0.0
    %313 = vmatpush1.msra.mxu0 0.0
    %314 = vmatprep.subr.mxu0 0.0
    %315 = vmatpush1.msra.mxu0 0.0
    %316 = vmatprep.subr.mxu0 0.0
    %317 = vmatpush1.msra.mxu0 0.0
    %318 = vmatprep.mubr.f32.mxu0 0.0
    %319 = vmatmul.mubr.f32.gmra.mrb[0].mxu0 %v231
    %v320 = vpop.f32.mrb[0].mxu0
    %v321 = vadd.f32 0.0, %v320
    %v322 = vpop.f32.mrb[0].mxu0
    %323 = vmatprep.mubr.f32.mxu0 0.0
    %324 = vmatmul.mubr.f32.gmra.mrb[0].mxu0 %v234
    %v325 = vpop.f32.mrb[0].mxu0
    %v326 = vadd.f32 0.0, %v325
    %v327 = vpop.f32.mrb[0].mxu0
    %328 = vmatprep.mubr.f32.mxu0 0.0
    %329 = vmatmul.mubr.f32.gmra.mrb[0].mxu0 %v237
    %v330 = vpop.f32.mrb[0].mxu0
    %v331 = vadd.f32 0.0, %v330
    %v332 = vpop.f32.mrb[0].mxu0
    %333 = vmatprep.mubr.f32.mxu0 0.0
    %334 = vmatmul.mubr.f32.gmra.mrb[0].mxu0 %v240
    %v335 = vpop.f32.mrb[0].mxu0
    %v336 = vadd.f32 0.0, %v335
    %v337 = vpop.f32.mrb[0].mxu0
    %338 = vmatprep.mubr.f32.mxu0 0.0
    %339 = vmatmul.mubr.f32.gmra.mrb[0].mxu0 %v243
    %v340 = vpop.f32.mrb[0].mxu0
    %v341 = vadd.f32 0.0, %v340
    %v342 = vpop.f32.mrb[0].mxu0
    %343 = vmatprep.mubr.f32.mxu0 0.0
    %344 = vmatmul.mubr.f32.gmra.mrb[0].mxu0 %v246
    %v345 = vpop.f32.mrb[0].mxu0
    %v346 = vadd.f32 0.0, %v345
    %v347 = vpop.f32.mrb[0].mxu0
    %348 = vmatprep.mubr.f32.mxu0 0.0
    %349 = vmatmul.mubr.f32.gmra.mrb[0].mxu0 %v249
    %v350 = vpop.f32.mrb[0].mxu0
    %v351 = vadd.f32 0.0, %v350
    %v352 = vpop.f32.mrb[0].mxu0
    %353 = vmatprep.mubr.f32.mxu0 0.0
    %354 = vmatmul.mubr.f32.gmra.mrb[0].mxu0 %v252
    %v355 = vpop.f32.mrb[0].mxu0
    %v356 = vadd.f32 0.0, %v355
    %v357 = vpop.f32.mrb[0].mxu0
    %358 = vdwg.mxu0
    %v360 = vsel %vm229, %v171, 0
    %v363 = vsel %vm229, %v172, 0
    %v366 = vsel %vm229, %v173, 0
    %v369 = vsel %vm229, %v174, 0
    %v372 = vsel %vm229, %v175, 0
    %v375 = vsel %vm229, %v176, 0
    %v378 = vsel %vm229, %v177, 0
    %v381 = vsel %vm229, %v178, 0
    %383 = vmatprep.subr.mxu0 0.0
    %384 = vmatpush1.msra.mxu0 %v129
    %385 = vmatprep.subr.mxu0 0.0
    %386 = vmatpush1.msra.mxu0 0.0
    %387 = vmatprep.subr.mxu0 0.0
    %388 = vmatpush1.msra.mxu0 0.0
    %389 = vmatprep.subr.mxu0 0.0
    %390 = vmatpush1.msra.mxu0 0.0
    %391 = vmatprep.subr.mxu0 0.0
    %392 = vmatpush1.msra.mxu0 0.0
    %393 = vmatprep.subr.mxu0 0.0
    %394 = vmatpush1.msra.mxu0 0.0
    %395 = vmatprep.subr.mxu0 0.0
    %396 = vmatpush1.msra.mxu0 0.0
    %397 = vmatprep.subr.mxu0 0.0
    %398 = vmatpush1.msra.mxu0 0.0
    %399 = vmatprep.subr.mxu0 0.0
    %400 = vmatpush1.msra.mxu0 0.0
    %401 = vmatprep.subr.mxu0 0.0
    %402 = vmatpush1.msra.mxu0 0.0
    %403 = vmatprep.subr.mxu0 0.0
    %404 = vmatpush1.msra.mxu0 0.0
    %405 = vmatprep.subr.mxu0 0.0
    %406 = vmatpush1.msra.mxu0 0.0
    %407 = vmatprep.subr.mxu0 0.0
    %408 = vmatpush1.msra.mxu0 0.0
    %409 = vmatprep.subr.mxu0 0.0
    %410 = vmatpush1.msra.mxu0 0.0
    %411 = vmatprep.subr.mxu0 0.0
    %412 = vmatpush1.msra.mxu0 0.0
    %413 = vmatprep.subr.mxu0 0.0
    %414 = vmatpush1.msra.mxu0 0.0
    %415 = vmatprep.subr.mxu0 0.0
    %416 = vmatpush1.msra.mxu0 0.0
    %417 = vmatprep.subr.mxu0 0.0
    %418 = vmatpush1.msra.mxu0 0.0
    %419 = vmatprep.subr.mxu0 0.0
    %420 = vmatpush1.msra.mxu0 0.0
    %421 = vmatprep.subr.mxu0 0.0
    %422 = vmatpush1.msra.mxu0 0.0
    %423 = vmatprep.subr.mxu0 0.0
    %424 = vmatpush1.msra.mxu0 0.0
    %425 = vmatprep.subr.mxu0 0.0
    %426 = vmatpush1.msra.mxu0 0.0
    %427 = vmatprep.subr.mxu0 0.0
    %428 = vmatpush1.msra.mxu0 0.0
    %429 = vmatprep.subr.mxu0 0.0
    %430 = vmatpush1.msra.mxu0 0.0
    %431 = vmatprep.subr.mxu0 0.0
    %432 = vmatpush1.msra.mxu0 0.0
    %433 = vmatprep.subr.mxu0 0.0
    %434 = vmatpush1.msra.mxu0 0.0
    %435 = vmatprep.subr.mxu0 0.0
    %436 = vmatpush1.msra.mxu0 0.0
    %437 = vmatprep.subr.mxu0 0.0
    %438 = vmatpush1.msra.mxu0 0.0
    %439 = vmatprep.subr.mxu0 0.0
    %440 = vmatpush1.msra.mxu0 0.0
    %441 = vmatprep.subr.mxu0 0.0
    %442 = vmatpush1.msra.mxu0 0.0
    %443 = vmatprep.subr.mxu0 0.0
    %444 = vmatpush1.msra.mxu0 0.0
    %445 = vmatprep.subr.mxu0 0.0
    %446 = vmatpush1.msra.mxu0 0.0
    %447 = vmatprep.mubr.f32.mxu0 0.0
    %448 = vmatmul.mubr.f32.gmra.mrb[0].mxu0 %v360
    %v449 = vpop.f32.mrb[0].mxu0
    %v450 = vadd.f32 %v321, %v449
    %v451 = vpop.f32.mrb[0].mxu0
    %452 = vmatprep.mubr.f32.mxu0 0.0
    %453 = vmatmul.mubr.f32.gmra.mrb[0].mxu0 %v363
    %v454 = vpop.f32.mrb[0].mxu0
    %v455 = vadd.f32 %v326, %v454
    %v456 = vpop.f32.mrb[0].mxu0
    %457 = vmatprep.mubr.f32.mxu0 0.0
    %458 = vmatmul.mubr.f32.gmra.mrb[0].mxu0 %v366
    %v459 = vpop.f32.mrb[0].mxu0
    %v460 = vadd.f32 %v331, %v459
    %v461 = vpop.f32.mrb[0].mxu0
    %462 = vmatprep.mubr.f32.mxu0 0.0
    %463 = vmatmul.mubr.f32.gmra.mrb[0].mxu0 %v369
    %v464 = vpop.f32.mrb[0].mxu0
    %v465 = vadd.f32 %v336, %v464
    %v466 = vpop.f32.mrb[0].mxu0
    %467 = vmatprep.mubr.f32.mxu0 0.0
    %468 = vmatmul.mubr.f32.gmra.mrb[0].mxu0 %v372
    %v469 = vpop.f32.mrb[0].mxu0
    %v470 = vadd.f32 %v341, %v469
    %v471 = vpop.f32.mrb[0].mxu0
    %472 = vmatprep.mubr.f32.mxu0 0.0
    %473 = vmatmul.mubr.f32.gmra.mrb[0].mxu0 %v375
    %v474 = vpop.f32.mrb[0].mxu0
    %v475 = vadd.f32 %v346, %v474
    %v476 = vpop.f32.mrb[0].mxu0
    %477 = vmatprep.mubr.f32.mxu0 0.0
    %478 = vmatmul.mubr.f32.gmra.mrb[0].mxu0 %v378
    %v479 = vpop.f32.mrb[0].mxu0
    %v480 = vadd.f32 %v351, %v479
    %v481 = vpop.f32.mrb[0].mxu0
    %482 = vmatprep.mubr.f32.mxu0 0.0
    %483 = vmatmul.mubr.f32.gmra.mrb[0].mxu0 %v381
    %v484 = vpop.f32.mrb[0].mxu0
    %v485 = vadd.f32 %v356, %v484
    %v486 = vpop.f32.mrb[0].mxu0
    %487 = vdwg.mxu0
    %v488 = vld [vmem:[%s1 + $0x10] sm:$0xff]
    %v490 = vsel %vm229, %v121, 0
    %v493 = vsel %vm229, %v122, 0
    %v496 = vsel %vm229, %v123, 0
    %v499 = vsel %vm229, %v124, 0
    %v502 = vsel %vm229, %v125, 0
    %v505 = vsel %vm229, %v126, 0
    %v508 = vsel %vm229, %v127, 0
    %v511 = vsel %vm229, %v128, 0
    %513 = vmatprep.subr.mxu0 0.0
    %514 = vmatpush1.msra.mxu0 %v488
    %515 = vmatprep.subr.mxu0 0.0
    %516 = vmatpush1.msra.mxu0 0.0
    %517 = vmatprep.subr.mxu0 0.0
    %518 = vmatpush1.msra.mxu0 0.0
    %519 = vmatprep.subr.mxu0 0.0
    %520 = vmatpush1.msra.mxu0 0.0
    %521 = vmatprep.subr.mxu0 0.0
    %522 = vmatpush1.msra.mxu0 0.0
    %523 = vmatprep.subr.mxu0 0.0
    %524 = vmatpush1.msra.mxu0 0.0
    %525 = vmatprep.subr.mxu0 0.0
    %526 = vmatpush1.msra.mxu0 0.0
    %527 = vmatprep.subr.mxu0 0.0
    %528 = vmatpush1.msra.mxu0 0.0
    %529 = vmatprep.subr.mxu0 0.0
    %530 = vmatpush1.msra.mxu0 0.0
    %531 = vmatprep.subr.mxu0 0.0
    %532 = vmatpush1.msra.mxu0 0.0
    %533 = vmatprep.subr.mxu0 0.0
    %534 = vmatpush1.msra.mxu0 0.0
    %535 = vmatprep.subr.mxu0 0.0
    %536 = vmatpush1.msra.mxu0 0.0
    %537 = vmatprep.subr.mxu0 0.0
    %538 = vmatpush1.msra.mxu0 0.0
    %539 = vmatprep.subr.mxu0 0.0
    %540 = vmatpush1.msra.mxu0 0.0
    %541 = vmatprep.subr.mxu0 0.0
    %542 = vmatpush1.msra.mxu0 0.0
    %543 = vmatprep.subr.mxu0 0.0
    %544 = vmatpush1.msra.mxu0 0.0
    %545 = vmatprep.subr.mxu0 0.0
    %546 = vmatpush1.msra.mxu0 0.0
    %547 = vmatprep.subr.mxu0 0.0
    %548 = vmatpush1.msra.mxu0 0.0
    %549 = vmatprep.subr.mxu0 0.0
    %550 = vmatpush1.msra.mxu0 0.0
    %551 = vmatprep.subr.mxu0 0.0
    %552 = vmatpush1.msra.mxu0 0.0
    %553 = vmatprep.subr.mxu0 0.0
    %554 = vmatpush1.msra.mxu0 0.0
    %555 = vmatprep.subr.mxu0 0.0
    %556 = vmatpush1.msra.mxu0 0.0
    %557 = vmatprep.subr.mxu0 0.0
    %558 = vmatpush1.msra.mxu0 0.0
    %559 = vmatprep.subr.mxu0 0.0
    %560 = vmatpush1.msra.mxu0 0.0
    %561 = vmatprep.subr.mxu0 0.0
    %562 = vmatpush1.msra.mxu0 0.0
    %563 = vmatprep.subr.mxu0 0.0
    %564 = vmatpush1.msra.mxu0 0.0
    %565 = vmatprep.subr.mxu0 0.0
    %566 = vmatpush1.msra.mxu0 0.0
    %567 = vmatprep.subr.mxu0 0.0
    %568 = vmatpush1.msra.mxu0 0.0
    %569 = vmatprep.subr.mxu0 0.0
    %570 = vmatpush1.msra.mxu0 0.0
    %571 = vmatprep.subr.mxu0 0.0
    %572 = vmatpush1.msra.mxu0 0.0
    %573 = vmatprep.subr.mxu0 0.0
    %574 = vmatpush1.msra.mxu0 0.0
    %575 = vmatprep.subr.mxu0 0.0
    %576 = vmatpush1.msra.mxu0 0.0
    %577 = vmatprep.mubr.f32.mxu0 0.0
    %578 = vmatmul.mubr.f32.gmra.mrb[0].mxu0 %v490
    %v579 = vpop.f32.mrb[0].mxu0
    %v580 = vadd.f32 0.0, %v579
    %v581 = vpop.f32.mrb[0].mxu0
    %582 = vmatprep.mubr.f32.mxu0 0.0
    %583 = vmatmul.mubr.f32.gmra.mrb[0].mxu0 %v493
    %v584 = vpop.f32.mrb[0].mxu0
    %v585 = vadd.f32 0.0, %v584
    %v586 = vpop.f32.mrb[0].mxu0
    %587 = vmatprep.mubr.f32.mxu0 0.0
    %588 = vmatmul.mubr.f32.gmra.mrb[0].mxu0 %v496
    %v589 = vpop.f32.mrb[0].mxu0
    %v590 = vadd.f32 0.0, %v589
    %v591 = vpop.f32.mrb[0].mxu0
    %592 = vmatprep.mubr.f32.mxu0 0.0
    %593 = vmatmul.mubr.f32.gmra.mrb[0].mxu0 %v499
    %v594 = vpop.f32.mrb[0].mxu0
    %v595 = vadd.f32 0.0, %v594
    %v596 = vpop.f32.mrb[0].mxu0
    %597 = vmatprep.mubr.f32.mxu0 0.0
    %598 = vmatmul.mubr.f32.gmra.mrb[0].mxu0 %v502
    %v599 = vpop.f32.mrb[0].mxu0
    %v600 = vadd.f32 0.0, %v599
    %v601 = vpop.f32.mrb[0].mxu0
    %602 = vmatprep.mubr.f32.mxu0 0.0
    %603 = vmatmul.mubr.f32.gmra.mrb[0].mxu0 %v505
    %v604 = vpop.f32.mrb[0].mxu0
    %v605 = vadd.f32 0.0, %v604
    %v606 = vpop.f32.mrb[0].mxu0
    %607 = vmatprep.mubr.f32.mxu0 0.0
    %608 = vmatmul.mubr.f32.gmra.mrb[0].mxu0 %v508
    %v609 = vpop.f32.mrb[0].mxu0
    %v610 = vadd.f32 0.0, %v609
    %v611 = vpop.f32.mrb[0].mxu0
    %612 = vmatprep.mubr.f32.mxu0 0.0
    %613 = vmatmul.mubr.f32.gmra.mrb[0].mxu0 %v511
    %v614 = vpop.f32.mrb[0].mxu0
    %v615 = vadd.f32 0.0, %v614
    %v616 = vpop.f32.mrb[0].mxu0
    %617 = vdwg.mxu0
    %v618 = vadd.f32 %v450, %v580
    %v619 = vadd.f32 %v455, %v585
    %v620 = vadd.f32 %v460, %v590
    %v621 = vadd.f32 %v465, %v595
    %v622 = vadd.f32 %v470, %v600
    %v623 = vadd.f32 %v475, %v605
    %v624 = vadd.f32 %v480, %v610
    %v625 = vadd.f32 %v485, %v615
    %v626 = vmax.f32 %v618, 0.0
    %v627 = vmax.f32 %v619, 0.0
    %v628 = vmax.f32 %v620, 0.0
    %v629 = vmax.f32 %v621, 0.0
    %v630 = vmax.f32 %v622, 0.0
    %v631 = vmax.f32 %v623, 0.0
    %v632 = vmax.f32 %v624, 0.0
    %v633 = vmax.f32 %v625, 0.0
    %v634 = vld [vmem:[%s1 + $0x18] sm:$0xff]
    %v635 = vld [vmem:[%s1 + $0x20] sm:$0xff]
    %v636 = vld [vmem:[%s1 + $0x28] sm:$0xff]
    %v637 = vld [vmem:[%s1 + $0x30] sm:$0xff]
    %v638 = vrot.slane %v626, 4
    %v639 = vrot.slane %v627, 4
    %v640 = vrot.slane %v628, 4
    %v641 = vrot.slane %v629, 4
    %v642 = vrot.slane %v630, 4
    %v643 = vrot.slane %v631, 4
    %v644 = vrot.slane %v632, 4
    %v645 = vrot.slane %v633, 4
    %vm646 = vcmp.lt.s32.totalorder %v17, 4
    %v647 = vsel %vm646, %v644, %v645
    %v648 = vsel %vm646, %v643, %v644
    %v649 = vsel %vm646, %v642, %v643
    %v650 = vsel %vm646, %v641, %v642
    %v651 = vsel %vm646, %v640, %v641
    %v652 = vsel %vm646, %v639, %v640
    %v653 = vsel %vm646, %v638, %v639
    %v654 = vsel %vm646, %v645, %v638
    %vm655 = vcmp.lt.s32.totalorder %v113, 4
    %vm656 = vcmp.lt.s32.totalorder %v114, 4
    %vm657 = vcmp.lt.s32.totalorder %v115, 4
    %vm658 = vcmp.lt.s32.totalorder %v116, 4
    %vm659 = vcmp.lt.s32.totalorder %v117, 4
    %vm660 = vcmp.lt.s32.totalorder %v118, 4
    %vm661 = vcmp.lt.s32.totalorder %v119, 4
    %vm662 = vcmp.lt.s32.totalorder %v120, 4
    %v663 = vsel %vm655, 1, 0
    %v664 = vsel %vm656, 1, 0
    %v665 = vsel %vm657, 1, 0
    %v666 = vsel %vm658, 1, 0
    %v667 = vsel %vm659, 1, 0
    %v668 = vsel %vm660, 1, 0
    %v669 = vsel %vm661, 1, 0
    %v670 = vsel %vm662, 1, 0
    %vm671 = vcmp.eq.s32.totalorder %v663, 1
    %vm672 = vcmp.eq.s32.totalorder %v664, 1
    %vm673 = vcmp.eq.s32.totalorder %v665, 1
    %vm674 = vcmp.eq.s32.totalorder %v666, 1
    %vm675 = vcmp.eq.s32.totalorder %v667, 1
    %vm676 = vcmp.eq.s32.totalorder %v668, 1
    %vm677 = vcmp.eq.s32.totalorder %v669, 1
    %vm678 = vcmp.eq.s32.totalorder %v670, 1
    %v679 = vsel %vm671, 0.0, %v654
    %v680 = vsel %vm672, 0.0, %v653
    %v681 = vsel %vm673, 0.0, %v652
    %v682 = vsel %vm674, 0.0, %v651
    %v683 = vsel %vm675, 0.0, %v650
    %v684 = vsel %vm676, 0.0, %v649
    %v685 = vsel %vm677, 0.0, %v648
    %v686 = vsel %vm678, 0.0, %v647
    %v687 = vld [vmem:[%s1 + $0x38] sm:$0xff]
    %v688 = vld [vmem:[%s1 + $0x40] sm:$0xff]
    %v689 = vld [vmem:[%s1 + $0x48] sm:$0xff]
    %v690 = vld [vmem:[%s1 + $0x50] sm:$0xff]
    %v691 = vrot.slane %v626, 6
    %v692 = vrot.slane %v627, 6
    %v693 = vrot.slane %v628, 6
    %v694 = vrot.slane %v629, 6
    %v695 = vrot.slane %v630, 6
    %v696 = vrot.slane %v631, 6
    %v697 = vrot.slane %v632, 6
    %v698 = vrot.slane %v633, 6
    %v699 = vsel %vm138, %v697, %v698
    %v700 = vsel %vm138, %v696, %v697
    %v701 = vsel %vm138, %v695, %v696
    %v702 = vsel %vm138, %v694, %v695
    %v703 = vsel %vm138, %v693, %v694
    %v704 = vsel %vm138, %v692, %v693
    %v705 = vsel %vm138, %v691, %v692
    %v706 = vsel %vm138, %v698, %v691
    %v707 = vsel %vm163, 0.0, %v706
    %v708 = vsel %vm164, 0.0, %v705
    %v709 = vsel %vm165, 0.0, %v704
    %v710 = vsel %vm166, 0.0, %v703
    %v711 = vsel %vm167, 0.0, %v702
    %v712 = vsel %vm168, 0.0, %v701
    %v713 = vsel %vm169, 0.0, %v700
    %v714 = vsel %vm170, 0.0, %v699
    %vm715 = vcmask 261120
    %v717 = vsel %vm715, %v707, 0
    %v720 = vsel %vm715, %v708, 0
    %v723 = vsel %vm715, %v709, 0
    %v726 = vsel %vm715, %v710, 0
    %v729 = vsel %vm715, %v711, 0
    %v732 = vsel %vm715, %v712, 0
    %v735 = vsel %vm715, %v713, 0
    %v738 = vsel %vm715, %v714, 0
    %740 = vmatprep.subr.mxu0 0.0
    %741 = vmatpush1.msra.mxu0 %v687
    %742 = vmatprep.subr.mxu0 0.0
    %743 = vmatpush1.msra.mxu0 %v688
    %744 = vmatprep.subr.mxu0 0.0
    %745 = vmatpush1.msra.mxu0 %v689
    %746 = vmatprep.subr.mxu0 0.0
    %747 = vmatpush1.msra.mxu0 %v690
    %748 = vmatprep.subr.mxu0 0.0
    %749 = vmatpush1.msra.mxu0 0.0
    %750 = vmatprep.subr.mxu0 0.0
    %751 = vmatpush1.msra.mxu0 0.0
    %752 = vmatprep.subr.mxu0 0.0
    %753 = vmatpush1.msra.mxu0 0.0
    %754 = vmatprep.subr.mxu0 0.0
    %755 = vmatpush1.msra.mxu0 0.0
    %756 = vmatprep.subr.mxu0 0.0
    %757 = vmatpush1.msra.mxu0 0.0
    %758 = vmatprep.subr.mxu0 0.0
    %759 = vmatpush1.msra.mxu0 0.0
    %760 = vmatprep.subr.mxu0 0.0
    %761 = vmatpush1.msra.mxu0 0.0
    %762 = vmatprep.subr.mxu0 0.0
    %763 = vmatpush1.msra.mxu0 0.0
    %764 = vmatprep.subr.mxu0 0.0
    %765 = vmatpush1.msra.mxu0 0.0
    %766 = vmatprep.subr.mxu0 0.0
    %767 = vmatpush1.msra.mxu0 0.0
    %768 = vmatprep.subr.mxu0 0.0
    %769 = vmatpush1.msra.mxu0 0.0
    %770 = vmatprep.subr.mxu0 0.0
    %771 = vmatpush1.msra.mxu0 0.0
    %772 = vmatprep.subr.mxu0 0.0
    %773 = vmatpush1.msra.mxu0 0.0
    %774 = vmatprep.subr.mxu0 0.0
    %775 = vmatpush1.msra.mxu0 0.0
    %776 = vmatprep.subr.mxu0 0.0
    %777 = vmatpush1.msra.mxu0 0.0
    %778 = vmatprep.subr.mxu0 0.0
    %779 = vmatpush1.msra.mxu0 0.0
    %780 = vmatprep.subr.mxu0 0.0
    %781 = vmatpush1.msra.mxu0 0.0
    %782 = vmatprep.subr.mxu0 0.0
    %783 = vmatpush1.msra.mxu0 0.0
    %784 = vmatprep.subr.mxu0 0.0
    %785 = vmatpush1.msra.mxu0 0.0
    %786 = vmatprep.subr.mxu0 0.0
    %787 = vmatpush1.msra.mxu0 0.0
    %788 = vmatprep.subr.mxu0 0.0
    %789 = vmatpush1.msra.mxu0 0.0
    %790 = vmatprep.subr.mxu0 0.0
    %791 = vmatpush1.msra.mxu0 0.0
    %792 = vmatprep.subr.mxu0 0.0
    %793 = vmatpush1.msra.mxu0 0.0
    %794 = vmatprep.subr.mxu0 0.0
    %795 = vmatpush1.msra.mxu0 0.0
    %796 = vmatprep.subr.mxu0 0.0
    %797 = vmatpush1.msra.mxu0 0.0
    %798 = vmatprep.subr.mxu0 0.0
    %799 = vmatpush1.msra.mxu0 0.0
    %800 = vmatprep.subr.mxu0 0.0
    %801 = vmatpush1.msra.mxu0 0.0
    %802 = vmatprep.subr.mxu0 0.0
    %803 = vmatpush1.msra.mxu0 0.0
    %804 = vmatprep.mubr.f32.mxu0 0.0
    %805 = vmatmul.mubr.f32.gmra.mrb[0].mxu0 %v717
    %v806 = vpop.f32.mrb[0].mxu0
    %v807 = vadd.f32 0.0, %v806
    %v808 = vpop.f32.mrb[0].mxu0
    %809 = vmatprep.mubr.f32.mxu0 0.0
    %810 = vmatmul.mubr.f32.gmra.mrb[0].mxu0 %v720
    %v811 = vpop.f32.mrb[0].mxu0
    %v812 = vadd.f32 0.0, %v811
    %v813 = vpop.f32.mrb[0].mxu0
    %814 = vmatprep.mubr.f32.mxu0 0.0
    %815 = vmatmul.mubr.f32.gmra.mrb[0].mxu0 %v723
    %v816 = vpop.f32.mrb[0].mxu0
    %v817 = vadd.f32 0.0, %v816
    %v818 = vpop.f32.mrb[0].mxu0
    %819 = vmatprep.mubr.f32.mxu0 0.0
    %820 = vmatmul.mubr.f32.gmra.mrb[0].mxu0 %v726
    %v821 = vpop.f32.mrb[0].mxu0
    %v822 = vadd.f32 0.0, %v821
    %v823 = vpop.f32.mrb[0].mxu0
    %824 = vmatprep.mubr.f32.mxu0 0.0
    %825 = vmatmul.mubr.f32.gmra.mrb[0].mxu0 %v729
    %v826 = vpop.f32.mrb[0].mxu0
    %v827 = vadd.f32 0.0, %v826
    %v828 = vpop.f32.mrb[0].mxu0
    %829 = vmatprep.mubr.f32.mxu0 0.0
    %830 = vmatmul.mubr.f32.gmra.mrb[0].mxu0 %v732
    %v831 = vpop.f32.mrb[0].mxu0
    %v832 = vadd.f32 0.0, %v831
    %v833 = vpop.f32.mrb[0].mxu0
    %834 = vmatprep.mubr.f32.mxu0 0.0
    %835 = vmatmul.mubr.f32.gmra.mrb[0].mxu0 %v735
    %v836 = vpop.f32.mrb[0].mxu0
    %v837 = vadd.f32 0.0, %v836
    %v838 = vpop.f32.mrb[0].mxu0
    %839 = vmatprep.mubr.f32.mxu0 0.0
    %840 = vmatmul.mubr.f32.gmra.mrb[0].mxu0 %v738
    %v841 = vpop.f32.mrb[0].mxu0
    %v842 = vadd.f32 0.0, %v841
    %v843 = vpop.f32.mrb[0].mxu0
    %844 = vdwg.mxu0
    %v846 = vsel %vm715, %v679, 0
    %v849 = vsel %vm715, %v680, 0
    %v852 = vsel %vm715, %v681, 0
    %v855 = vsel %vm715, %v682, 0
    %v858 = vsel %vm715, %v683, 0
    %v861 = vsel %vm715, %v684, 0
    %v864 = vsel %vm715, %v685, 0
    %v867 = vsel %vm715, %v686, 0
    %869 = vmatprep.subr.mxu0 0.0
    %870 = vmatpush1.msra.mxu0 %v634
    %871 = vmatprep.subr.mxu0 0.0
    %872 = vmatpush1.msra.mxu0 %v635
    %873 = vmatprep.subr.mxu0 0.0
    %874 = vmatpush1.msra.mxu0 %v636
    %875 = vmatprep.subr.mxu0 0.0
    %876 = vmatpush1.msra.mxu0 %v637
    %877 = vmatprep.subr.mxu0 0.0
    %878 = vmatpush1.msra.mxu0 0.0
    %879 = vmatprep.subr.mxu0 0.0
    %880 = vmatpush1.msra.mxu0 0.0
    %881 = vmatprep.subr.mxu0 0.0
    %882 = vmatpush1.msra.mxu0 0.0
    %883 = vmatprep.subr.mxu0 0.0
    %884 = vmatpush1.msra.mxu0 0.0
    %885 = vmatprep.subr.mxu0 0.0
    %886 = vmatpush1.msra.mxu0 0.0
    %887 = vmatprep.subr.mxu0 0.0
    %888 = vmatpush1.msra.mxu0 0.0
    %889 = vmatprep.subr.mxu0 0.0
    %890 = vmatpush1.msra.mxu0 0.0
    %891 = vmatprep.subr.mxu0 0.0
    %892 = vmatpush1.msra.mxu0 0.0
    %893 = vmatprep.subr.mxu0 0.0
    %894 = vmatpush1.msra.mxu0 0.0
    %895 = vmatprep.subr.mxu0 0.0
    %896 = vmatpush1.msra.mxu0 0.0
    %897 = vmatprep.subr.mxu0 0.0
    %898 = vmatpush1.msra.mxu0 0.0
    %899 = vmatprep.subr.mxu0 0.0
    %900 = vmatpush1.msra.mxu0 0.0
    %901 = vmatprep.subr.mxu0 0.0
    %902 = vmatpush1.msra.mxu0 0.0
    %903 = vmatprep.subr.mxu0 0.0
    %904 = vmatpush1.msra.mxu0 0.0
    %905 = vmatprep.subr.mxu0 0.0
    %906 = vmatpush1.msra.mxu0 0.0
    %907 = vmatprep.subr.mxu0 0.0
    %908 = vmatpush1.msra.mxu0 0.0
    %909 = vmatprep.subr.mxu0 0.0
    %910 = vmatpush1.msra.mxu0 0.0
    %911 = vmatprep.subr.mxu0 0.0
    %912 = vmatpush1.msra.mxu0 0.0
    %913 = vmatprep.subr.mxu0 0.0
    %914 = vmatpush1.msra.mxu0 0.0
    %915 = vmatprep.subr.mxu0 0.0
    %916 = vmatpush1.msra.mxu0 0.0
    %917 = vmatprep.subr.mxu0 0.0
    %918 = vmatpush1.msra.mxu0 0.0
    %919 = vmatprep.subr.mxu0 0.0
    %920 = vmatpush1.msra.mxu0 0.0
    %921 = vmatprep.subr.mxu0 0.0
    %922 = vmatpush1.msra.mxu0 0.0
    %923 = vmatprep.subr.mxu0 0.0
    %924 = vmatpush1.msra.mxu0 0.0
    %925 = vmatprep.subr.mxu0 0.0
    %926 = vmatpush1.msra.mxu0 0.0
    %927 = vmatprep.subr.mxu0 0.0
    %928 = vmatpush1.msra.mxu0 0.0
    %929 = vmatprep.subr.mxu0 0.0
    %930 = vmatpush1.msra.mxu0 0.0
    %931 = vmatprep.subr.mxu0 0.0
    %932 = vmatpush1.msra.mxu0 0.0
    %933 = vmatprep.mubr.f32.mxu0 0.0
    %934 = vmatmul.mubr.f32.gmra.mrb[0].mxu0 %v846
    %v935 = vpop.f32.mrb[0].mxu0
    %v936 = vadd.f32 %v807, %v935
    %v937 = vpop.f32.mrb[0].mxu0
    %938 = vmatprep.mubr.f32.mxu0 0.0
    %939 = vmatmul.mubr.f32.gmra.mrb[0].mxu0 %v849
    %v940 = vpop.f32.mrb[0].mxu0
    %v941 = vadd.f32 %v812, %v940
    %v942 = vpop.f32.mrb[0].mxu0
    %943 = vmatprep.mubr.f32.mxu0 0.0
    %944 = vmatmul.mubr.f32.gmra.mrb[0].mxu0 %v852
    %v945 = vpop.f32.mrb[0].mxu0
    %v946 = vadd.f32 %v817, %v945
    %v947 = vpop.f32.mrb[0].mxu0
    %948 = vmatprep.mubr.f32.mxu0 0.0
    %949 = vmatmul.mubr.f32.gmra.mrb[0].mxu0 %v855
    %v950 = vpop.f32.mrb[0].mxu0
    %v951 = vadd.f32 %v822, %v950
    %v952 = vpop.f32.mrb[0].mxu0
    %953 = vmatprep.mubr.f32.mxu0 0.0
    %954 = vmatmul.mubr.f32.gmra.mrb[0].mxu0 %v858
    %v955 = vpop.f32.mrb[0].mxu0
    %v956 = vadd.f32 %v827, %v955
    %v957 = vpop.f32.mrb[0].mxu0
    %958 = vmatprep.mubr.f32.mxu0 0.0
    %959 = vmatmul.mubr.f32.gmra.mrb[0].mxu0 %v861
    %v960 = vpop.f32.mrb[0].mxu0
    %v961 = vadd.f32 %v832, %v960
    %v962 = vpop.f32.mrb[0].mxu0
    %963 = vmatprep.mubr.f32.mxu0 0.0
    %964 = vmatmul.mubr.f32.gmra.mrb[0].mxu0 %v864
    %v965 = vpop.f32.mrb[0].mxu0
    %v966 = vadd.f32 %v837, %v965
    %v967 = vpop.f32.mrb[0].mxu0
    %968 = vmatprep.mubr.f32.mxu0 0.0
    %969 = vmatmul.mubr.f32.gmra.mrb[0].mxu0 %v867
    %v970 = vpop.f32.mrb[0].mxu0
    %v971 = vadd.f32 %v842, %v970
    %v972 = vpop.f32.mrb[0].mxu0
    %973 = vdwg.mxu0
    %v974 = vld [vmem:[%s1 + $0x58] sm:$0xff]
    %v975 = vld [vmem:[%s1 + $0x60] sm:$0xff]
    %v976 = vld [vmem:[%s1 + $0x68] sm:$0xff]
    %v977 = vld [vmem:[%s1 + $0x70] sm:$0xff]
    %v979 = vsel %vm715, %v626, 0
    %v982 = vsel %vm715, %v627, 0
    %v985 = vsel %vm715, %v628, 0
    %v988 = vsel %vm715, %v629, 0
    %v991 = vsel %vm715, %v630, 0
    %v994 = vsel %vm715, %v631, 0
    %v997 = vsel %vm715, %v632, 0
    %v1000 = vsel %vm715, %v633, 0
    %1002 = vmatprep.subr.mxu0 0.0
    %1003 = vmatpush1.msra.mxu0 %v974
    %1004 = vmatprep.subr.mxu0 0.0
    %1005 = vmatpush1.msra.mxu0 %v975
    %1006 = vmatprep.subr.mxu0 0.0
    %1007 = vmatpush1.msra.mxu0 %v976
    %1008 = vmatprep.subr.mxu0 0.0
    %1009 = vmatpush1.msra.mxu0 %v977
    %1010 = vmatprep.subr.mxu0 0.0
    %1011 = vmatpush1.msra.mxu0 0.0
    %1012 = vmatprep.subr.mxu0 0.0
    %1013 = vmatpush1.msra.mxu0 0.0
    %1014 = vmatprep.subr.mxu0 0.0
    %1015 = vmatpush1.msra.mxu0 0.0
    %1016 = vmatprep.subr.mxu0 0.0
    %1017 = vmatpush1.msra.mxu0 0.0
    %1018 = vmatprep.subr.mxu0 0.0
    %1019 = vmatpush1.msra.mxu0 0.0
    %1020 = vmatprep.subr.mxu0 0.0
    %1021 = vmatpush1.msra.mxu0 0.0
    %1022 = vmatprep.subr.mxu0 0.0
    %1023 = vmatpush1.msra.mxu0 0.0
    %1024 = vmatprep.subr.mxu0 0.0
    %1025 = vmatpush1.msra.mxu0 0.0
    %1026 = vmatprep.subr.mxu0 0.0
    %1027 = vmatpush1.msra.mxu0 0.0
    %1028 = vmatprep.subr.mxu0 0.0
    %1029 = vmatpush1.msra.mxu0 0.0
    %1030 = vmatprep.subr.mxu0 0.0
    %1031 = vmatpush1.msra.mxu0 0.0
    %1032 = vmatprep.subr.mxu0 0.0
    %1033 = vmatpush1.msra.mxu0 0.0
    %1034 = vmatprep.subr.mxu0 0.0
    %1035 = vmatpush1.msra.mxu0 0.0
    %1036 = vmatprep.subr.mxu0 0.0
    %1037 = vmatpush1.msra.mxu0 0.0
    %1038 = vmatprep.subr.mxu0 0.0
    %1039 = vmatpush1.msra.mxu0 0.0
    %1040 = vmatprep.subr.mxu0 0.0
    %1041 = vmatpush1.msra.mxu0 0.0
    %1042 = vmatprep.subr.mxu0 0.0
    %1043 = vmatpush1.msra.mxu0 0.0
    %1044 = vmatprep.subr.mxu0 0.0
    %1045 = vmatpush1.msra.mxu0 0.0
    %1046 = vmatprep.subr.mxu0 0.0
    %1047 = vmatpush1.msra.mxu0 0.0
    %1048 = vmatprep.subr.mxu0 0.0
    %1049 = vmatpush1.msra.mxu0 0.0
    %1050 = vmatprep.subr.mxu0 0.0
    %1051 = vmatpush1.msra.mxu0 0.0
    %1052 = vmatprep.subr.mxu0 0.0
    %1053 = vmatpush1.msra.mxu0 0.0
    %1054 = vmatprep.subr.mxu0 0.0
    %1055 = vmatpush1.msra.mxu0 0.0
    %1056 = vmatprep.subr.mxu0 0.0
    %1057 = vmatpush1.msra.mxu0 0.0
    %1058 = vmatprep.subr.mxu0 0.0
    %1059 = vmatpush1.msra.mxu0 0.0
    %1060 = vmatprep.subr.mxu0 0.0
    %1061 = vmatpush1.msra.mxu0 0.0
    %1062 = vmatprep.subr.mxu0 0.0
    %1063 = vmatpush1.msra.mxu0 0.0
    %1064 = vmatprep.subr.mxu0 0.0
    %1065 = vmatpush1.msra.mxu0 0.0
    %1066 = vmatprep.mubr.f32.mxu0 0.0
    %1067 = vmatmul.mubr.f32.gmra.mrb[0].mxu0 %v979
    %v1068 = vpop.f32.mrb[0].mxu0
    %v1069 = vadd.f32 0.0, %v1068
    %v1070 = vpop.f32.mrb[0].mxu0
    %1071 = vmatprep.mubr.f32.mxu0 0.0
    %1072 = vmatmul.mubr.f32.gmra.mrb[0].mxu0 %v982
    %v1073 = vpop.f32.mrb[0].mxu0
    %v1074 = vadd.f32 0.0, %v1073
    %v1075 = vpop.f32.mrb[0].mxu0
    %1076 = vmatprep.mubr.f32.mxu0 0.0
    %1077 = vmatmul.mubr.f32.gmra.mrb[0].mxu0 %v985
    %v1078 = vpop.f32.mrb[0].mxu0
    %v1079 = vadd.f32 0.0, %v1078
    %v1080 = vpop.f32.mrb[0].mxu0
    %1081 = vmatprep.mubr.f32.mxu0 0.0
    %1082 = vmatmul.mubr.f32.gmra.mrb[0].mxu0 %v988
    %v1083 = vpop.f32.mrb[0].mxu0
    %v1084 = vadd.f32 0.0, %v1083
    %v1085 = vpop.f32.mrb[0].mxu0
    %1086 = vmatprep.mubr.f32.mxu0 0.0
    %1087 = vmatmul.mubr.f32.gmra.mrb[0].mxu0 %v991
    %v1088 = vpop.f32.mrb[0].mxu0
    %v1089 = vadd.f32 0.0, %v1088
    %v1090 = vpop.f32.mrb[0].mxu0
    %1091 = vmatprep.mubr.f32.mxu0 0.0
    %1092 = vmatmul.mubr.f32.gmra.mrb[0].mxu0 %v994
    %v1093 = vpop.f32.mrb[0].mxu0
    %v1094 = vadd.f32 0.0, %v1093
    %v1095 = vpop.f32.mrb[0].mxu0
    %1096 = vmatprep.mubr.f32.mxu0 0.0
    %1097 = vmatmul.mubr.f32.gmra.mrb[0].mxu0 %v997
    %v1098 = vpop.f32.mrb[0].mxu0
    %v1099 = vadd.f32 0.0, %v1098
    %v1100 = vpop.f32.mrb[0].mxu0
    %1101 = vmatprep.mubr.f32.mxu0 0.0
    %1102 = vmatmul.mubr.f32.gmra.mrb[0].mxu0 %v1000
    %v1103 = vpop.f32.mrb[0].mxu0
    %v1104 = vadd.f32 0.0, %v1103
    %v1105 = vpop.f32.mrb[0].mxu0
    %1106 = vdwg.mxu0
    %v1107 = vadd.f32 %v936, %v1069
    %v1108 = vadd.f32 %v941, %v1074
    %v1109 = vadd.f32 %v946, %v1079
    %v1110 = vadd.f32 %v951, %v1084
    %v1111 = vadd.f32 %v956, %v1089
    %v1112 = vadd.f32 %v961, %v1094
    %v1113 = vadd.f32 %v966, %v1099
    %v1114 = vadd.f32 %v971, %v1104
    %v1115 = vmax.f32 %v1107, 0.0
    %v1116 = vmax.f32 %v1108, 0.0
    %v1117 = vmax.f32 %v1109, 0.0
    %v1118 = vmax.f32 %v1110, 0.0
    %v1119 = vmax.f32 %v1111, 0.0
    %v1120 = vmax.f32 %v1112, 0.0
    %v1121 = vmax.f32 %v1113, 0.0
    %v1122 = vmax.f32 %v1114, 0.0
    %v1123 = vld [vmem:[%s1 + $0x78] sm:$0xff]
    %v1124 = vld [vmem:[%s1 + $0x80] sm:$0xff]
    %v1125 = vld [vmem:[%s1 + $0x88] sm:$0xff]
    %v1126 = vld [vmem:[%s1 + $0x90] sm:$0xff]
    %vm1127 = vcmp.lt.s32.totalorder %v113, 8
    %vm1128 = vcmp.lt.s32.totalorder %v114, 8
    %vm1129 = vcmp.lt.s32.totalorder %v115, 8
    %vm1130 = vcmp.lt.s32.totalorder %v116, 8
    %vm1131 = vcmp.lt.s32.totalorder %v117, 8
    %vm1132 = vcmp.lt.s32.totalorder %v118, 8
    %vm1133 = vcmp.lt.s32.totalorder %v119, 8
    %vm1134 = vcmp.lt.s32.totalorder %v120, 8
    %v1135 = vsel %vm1127, 1, 0
    %v1136 = vsel %vm1128, 1, 0
    %v1137 = vsel %vm1129, 1, 0
    %v1138 = vsel %vm1130, 1, 0
    %v1139 = vsel %vm1131, 1, 0
    %v1140 = vsel %vm1132, 1, 0
    %v1141 = vsel %vm1133, 1, 0
    %v1142 = vsel %vm1134, 1, 0
    %vm1143 = vcmp.eq.s32.totalorder %v1135, 1
    %vm1144 = vcmp.eq.s32.totalorder %v1136, 1
    %vm1145 = vcmp.eq.s32.totalorder %v1137, 1
    %vm1146 = vcmp.eq.s32.totalorder %v1138, 1
    %vm1147 = vcmp.eq.s32.totalorder %v1139, 1
    %vm1148 = vcmp.eq.s32.totalorder %v1140, 1
    %vm1149 = vcmp.eq.s32.totalorder %v1141, 1
    %vm1150 = vcmp.eq.s32.totalorder %v1142, 1
    %v1151 = vsel %vm1143, 0.0, %v1122
    %v1152 = vsel %vm1144, 0.0, %v1115
    %v1153 = vsel %vm1145, 0.0, %v1116
    %v1154 = vsel %vm1146, 0.0, %v1117
    %v1155 = vsel %vm1147, 0.0, %v1118
    %v1156 = vsel %vm1148, 0.0, %v1119
    %v1157 = vsel %vm1149, 0.0, %v1120
    %v1158 = vsel %vm1150, 0.0, %v1121
    %v1159 = vld [vmem:[%s1 + $0x98] sm:$0xff]
    %v1160 = vld [vmem:[%s1 + $0xa0] sm:$0xff]
    %v1161 = vld [vmem:[%s1 + $0xa8] sm:$0xff]
    %v1162 = vld [vmem:[%s1 + $0xb0] sm:$0xff]
    %v1163 = vrot.slane %v1115, 4
    %v1164 = vrot.slane %v1116, 4
    %v1165 = vrot.slane %v1117, 4
    %v1166 = vrot.slane %v1118, 4
    %v1167 = vrot.slane %v1119, 4
    %v1168 = vrot.slane %v1120, 4
    %v1169 = vrot.slane %v1121, 4
    %v1170 = vrot.slane %v1122, 4
    %v1171 = vsel %vm646, %v1169, %v1170
    %v1172 = vsel %vm646, %v1168, %v1169
    %v1173 = vsel %vm646, %v1167, %v1168
    %v1174 = vsel %vm646, %v1166, %v1167
    %v1175 = vsel %vm646, %v1165, %v1166
    %v1176 = vsel %vm646, %v1164, %v1165
    %v1177 = vsel %vm646, %v1163, %v1164
    %v1178 = vsel %vm646, %v1170, %v1163
    %v1179 = vsel %vm671, 0.0, %v1178
    %v1180 = vsel %vm672, 0.0, %v1177
    %v1181 = vsel %vm673, 0.0, %v1176
    %v1182 = vsel %vm674, 0.0, %v1175
    %v1183 = vsel %vm675, 0.0, %v1174
    %v1184 = vsel %vm676, 0.0, %v1173
    %v1185 = vsel %vm677, 0.0, %v1172
    %v1186 = vsel %vm678, 0.0, %v1171
    %v1188 = vsel %vm715, %v1179, 0
    %v1191 = vsel %vm715, %v1180, 0
    %v1194 = vsel %vm715, %v1181, 0
    %v1197 = vsel %vm715, %v1182, 0
    %v1200 = vsel %vm715, %v1183, 0
    %v1203 = vsel %vm715, %v1184, 0
    %v1206 = vsel %vm715, %v1185, 0
    %v1209 = vsel %vm715, %v1186, 0
    %1211 = vmatprep.subr.mxu0 0.0
    %1212 = vmatpush1.msra.mxu0 %v1159
    %1213 = vmatprep.subr.mxu0 0.0
    %1214 = vmatpush1.msra.mxu0 %v1160
    %1215 = vmatprep.subr.mxu0 0.0
    %1216 = vmatpush1.msra.mxu0 %v1161
    %1217 = vmatprep.subr.mxu0 0.0
    %1218 = vmatpush1.msra.mxu0 %v1162
    %1219 = vmatprep.subr.mxu0 0.0
    %1220 = vmatpush1.msra.mxu0 0.0
    %1221 = vmatprep.subr.mxu0 0.0
    %1222 = vmatpush1.msra.mxu0 0.0
    %1223 = vmatprep.subr.mxu0 0.0
    %1224 = vmatpush1.msra.mxu0 0.0
    %1225 = vmatprep.subr.mxu0 0.0
    %1226 = vmatpush1.msra.mxu0 0.0
    %1227 = vmatprep.subr.mxu0 0.0
    %1228 = vmatpush1.msra.mxu0 0.0
    %1229 = vmatprep.subr.mxu0 0.0
    %1230 = vmatpush1.msra.mxu0 0.0
    %1231 = vmatprep.subr.mxu0 0.0
    %1232 = vmatpush1.msra.mxu0 0.0
    %1233 = vmatprep.subr.mxu0 0.0
    %1234 = vmatpush1.msra.mxu0 0.0
    %1235 = vmatprep.subr.mxu0 0.0
    %1236 = vmatpush1.msra.mxu0 0.0
    %1237 = vmatprep.subr.mxu0 0.0
    %1238 = vmatpush1.msra.mxu0 0.0
    %1239 = vmatprep.subr.mxu0 0.0
    %1240 = vmatpush1.msra.mxu0 0.0
    %1241 = vmatprep.subr.mxu0 0.0
    %1242 = vmatpush1.msra.mxu0 0.0
    %1243 = vmatprep.subr.mxu0 0.0
    %1244 = vmatpush1.msra.mxu0 0.0
    %1245 = vmatprep.subr.mxu0 0.0
    %1246 = vmatpush1.msra.mxu0 0.0
    %1247 = vmatprep.subr.mxu0 0.0
    %1248 = vmatpush1.msra.mxu0 0.0
    %1249 = vmatprep.subr.mxu0 0.0
    %1250 = vmatpush1.msra.mxu0 0.0
    %1251 = vmatprep.subr.mxu0 0.0
    %1252 = vmatpush1.msra.mxu0 0.0
    %1253 = vmatprep.subr.mxu0 0.0
    %1254 = vmatpush1.msra.mxu0 0.0
    %1255 = vmatprep.subr.mxu0 0.0
    %1256 = vmatpush1.msra.mxu0 0.0
    %1257 = vmatprep.subr.mxu0 0.0
    %1258 = vmatpush1.msra.mxu0 0.0
    %1259 = vmatprep.subr.mxu0 0.0
    %1260 = vmatpush1.msra.mxu0 0.0
    %1261 = vmatprep.subr.mxu0 0.0
    %1262 = vmatpush1.msra.mxu0 0.0
    %1263 = vmatprep.subr.mxu0 0.0
    %1264 = vmatpush1.msra.mxu0 0.0
    %1265 = vmatprep.subr.mxu0 0.0
    %1266 = vmatpush1.msra.mxu0 0.0
    %1267 = vmatprep.subr.mxu0 0.0
    %1268 = vmatpush1.msra.mxu0 0.0
    %1269 = vmatprep.subr.mxu0 0.0
    %1270 = vmatpush1.msra.mxu0 0.0
    %1271 = vmatprep.subr.mxu0 0.0
    %1272 = vmatpush1.msra.mxu0 0.0
    %1273 = vmatprep.subr.mxu0 0.0
    %1274 = vmatpush1.msra.mxu0 0.0
    %1275 = vmatprep.mubr.f32.mxu0 0.0
    %1276 = vmatmul.mubr.f32.gmra.mrb[0].mxu0 %v1188
    %v1277 = vpop.f32.mrb[0].mxu0
    %v1278 = vadd.f32 0.0, %v1277
    %v1279 = vpop.f32.mrb[0].mxu0
    %1280 = vmatprep.mubr.f32.mxu0 0.0
    %1281 = vmatmul.mubr.f32.gmra.mrb[0].mxu0 %v1191
    %v1282 = vpop.f32.mrb[0].mxu0
    %v1283 = vadd.f32 0.0, %v1282
    %v1284 = vpop.f32.mrb[0].mxu0
    %1285 = vmatprep.mubr.f32.mxu0 0.0
    %1286 = vmatmul.mubr.f32.gmra.mrb[0].mxu0 %v1194
    %v1287 = vpop.f32.mrb[0].mxu0
    %v1288 = vadd.f32 0.0, %v1287
    %v1289 = vpop.f32.mrb[0].mxu0
    %1290 = vmatprep.mubr.f32.mxu0 0.0
    %1291 = vmatmul.mubr.f32.gmra.mrb[0].mxu0 %v1197
    %v1292 = vpop.f32.mrb[0].mxu0
    %v1293 = vadd.f32 0.0, %v1292
    %v1294 = vpop.f32.mrb[0].mxu0
    %1295 = vmatprep.mubr.f32.mxu0 0.0
    %1296 = vmatmul.mubr.f32.gmra.mrb[0].mxu0 %v1200
    %v1297 = vpop.f32.mrb[0].mxu0
    %v1298 = vadd.f32 0.0, %v1297
    %v1299 = vpop.f32.mrb[0].mxu0
    %1300 = vmatprep.mubr.f32.mxu0 0.0
    %1301 = vmatmul.mubr.f32.gmra.mrb[0].mxu0 %v1203
    %v1302 = vpop.f32.mrb[0].mxu0
    %v1303 = vadd.f32 0.0, %v1302
    %v1304 = vpop.f32.mrb[0].mxu0
    %1305 = vmatprep.mubr.f32.mxu0 0.0
    %1306 = vmatmul.mubr.f32.gmra.mrb[0].mxu0 %v1206
    %v1307 = vpop.f32.mrb[0].mxu0
    %v1308 = vadd.f32 0.0, %v1307
    %v1309 = vpop.f32.mrb[0].mxu0
    %1310 = vmatprep.mubr.f32.mxu0 0.0
    %1311 = vmatmul.mubr.f32.gmra.mrb[0].mxu0 %v1209
    %v1312 = vpop.f32.mrb[0].mxu0
    %v1313 = vadd.f32 0.0, %v1312
    %v1314 = vpop.f32.mrb[0].mxu0
    %1315 = vdwg.mxu0
    %v1317 = vsel %vm715, %v1151, 0
    %v1320 = vsel %vm715, %v1152, 0
    %v1323 = vsel %vm715, %v1153, 0
    %v1326 = vsel %vm715, %v1154, 0
    %v1329 = vsel %vm715, %v1155, 0
    %v1332 = vsel %vm715, %v1156, 0
    %v1335 = vsel %vm715, %v1157, 0
    %v1338 = vsel %vm715, %v1158, 0
    %1340 = vmatprep.subr.mxu0 0.0
    %1341 = vmatpush1.msra.mxu0 %v1123
    %1342 = vmatprep.subr.mxu0 0.0
    %1343 = vmatpush1.msra.mxu0 %v1124
    %1344 = vmatprep.subr.mxu0 0.0
    %1345 = vmatpush1.msra.mxu0 %v1125
    %1346 = vmatprep.subr.mxu0 0.0
    %1347 = vmatpush1.msra.mxu0 %v1126
    %1348 = vmatprep.subr.mxu0 0.0
    %1349 = vmatpush1.msra.mxu0 0.0
    %1350 = vmatprep.subr.mxu0 0.0
    %1351 = vmatpush1.msra.mxu0 0.0
    %1352 = vmatprep.subr.mxu0 0.0
    %1353 = vmatpush1.msra.mxu0 0.0
    %1354 = vmatprep.subr.mxu0 0.0
    %1355 = vmatpush1.msra.mxu0 0.0
    %1356 = vmatprep.subr.mxu0 0.0
    %1357 = vmatpush1.msra.mxu0 0.0
    %1358 = vmatprep.subr.mxu0 0.0
    %1359 = vmatpush1.msra.mxu0 0.0
    %1360 = vmatprep.subr.mxu0 0.0
    %1361 = vmatpush1.msra.mxu0 0.0
    %1362 = vmatprep.subr.mxu0 0.0
    %1363 = vmatpush1.msra.mxu0 0.0
    %1364 = vmatprep.subr.mxu0 0.0
    %1365 = vmatpush1.msra.mxu0 0.0
    %1366 = vmatprep.subr.mxu0 0.0
    %1367 = vmatpush1.msra.mxu0 0.0
    %1368 = vmatprep.subr.mxu0 0.0
    %1369 = vmatpush1.msra.mxu0 0.0
    %1370 = vmatprep.subr.mxu0 0.0
    %1371 = vmatpush1.msra.mxu0 0.0
    %1372 = vmatprep.subr.mxu0 0.0
    %1373 = vmatpush1.msra.mxu0 0.0
    %1374 = vmatprep.subr.mxu0 0.0
    %1375 = vmatpush1.msra.mxu0 0.0
    %1376 = vmatprep.subr.mxu0 0.0
    %1377 = vmatpush1.msra.mxu0 0.0
    %1378 = vmatprep.subr.mxu0 0.0
    %1379 = vmatpush1.msra.mxu0 0.0
    %1380 = vmatprep.subr.mxu0 0.0
    %1381 = vmatpush1.msra.mxu0 0.0
    %1382 = vmatprep.subr.mxu0 0.0
    %1383 = vmatpush1.msra.mxu0 0.0
    %1384 = vmatprep.subr.mxu0 0.0
    %1385 = vmatpush1.msra.mxu0 0.0
    %1386 = vmatprep.subr.mxu0 0.0
    %1387 = vmatpush1.msra.mxu0 0.0
    %1388 = vmatprep.subr.mxu0 0.0
    %1389 = vmatpush1.msra.mxu0 0.0
    %1390 = vmatprep.subr.mxu0 0.0
    %1391 = vmatpush1.msra.mxu0 0.0
    %1392 = vmatprep.subr.mxu0 0.0
    %1393 = vmatpush1.msra.mxu0 0.0
    %1394 = vmatprep.subr.mxu0 0.0
    %1395 = vmatpush1.msra.mxu0 0.0
    %1396 = vmatprep.subr.mxu0 0.0
    %1397 = vmatpush1.msra.mxu0 0.0
    %1398 = vmatprep.subr.mxu0 0.0
    %1399 = vmatpush1.msra.mxu0 0.0
    %1400 = vmatprep.subr.mxu0 0.0
    %1401 = vmatpush1.msra.mxu0 0.0
    %1402 = vmatprep.subr.mxu0 0.0
    %1403 = vmatpush1.msra.mxu0 0.0
    %1404 = vmatprep.mubr.f32.mxu0 0.0
    %1405 = vmatmul.mubr.f32.gmra.mrb[0].mxu0 %v1317
    %v1406 = vpop.f32.mrb[0].mxu0
    %v1407 = vadd.f32 %v1278, %v1406
    %v1408 = vpop.f32.mrb[0].mxu0
    %1409 = vmatprep.mubr.f32.mxu0 0.0
    %1410 = vmatmul.mubr.f32.gmra.mrb[0].mxu0 %v1320
    %v1411 = vpop.f32.mrb[0].mxu0
    %v1412 = vadd.f32 %v1283, %v1411
    %v1413 = vpop.f32.mrb[0].mxu0
    %1414 = vmatprep.mubr.f32.mxu0 0.0
    %1415 = vmatmul.mubr.f32.gmra.mrb[0].mxu0 %v1323
    %v1416 = vpop.f32.mrb[0].mxu0
    %v1417 = vadd.f32 %v1288, %v1416
    %v1418 = vpop.f32.mrb[0].mxu0
    %1419 = vmatprep.mubr.f32.mxu0 0.0
    %1420 = vmatmul.mubr.f32.gmra.mrb[0].mxu0 %v1326
    %v1421 = vpop.f32.mrb[0].mxu0
    %v1422 = vadd.f32 %v1293, %v1421
    %v1423 = vpop.f32.mrb[0].mxu0
    %1424 = vmatprep.mubr.f32.mxu0 0.0
    %1425 = vmatmul.mubr.f32.gmra.mrb[0].mxu0 %v1329
    %v1426 = vpop.f32.mrb[0].mxu0
    %v1427 = vadd.f32 %v1298, %v1426
    %v1428 = vpop.f32.mrb[0].mxu0
    %1429 = vmatprep.mubr.f32.mxu0 0.0
    %1430 = vmatmul.mubr.f32.gmra.mrb[0].mxu0 %v1332
    %v1431 = vpop.f32.mrb[0].mxu0
    %v1432 = vadd.f32 %v1303, %v1431
    %v1433 = vpop.f32.mrb[0].mxu0
    %1434 = vmatprep.mubr.f32.mxu0 0.0
    %1435 = vmatmul.mubr.f32.gmra.mrb[0].mxu0 %v1335
    %v1436 = vpop.f32.mrb[0].mxu0
    %v1437 = vadd.f32 %v1308, %v1436
    %v1438 = vpop.f32.mrb[0].mxu0
    %1439 = vmatprep.mubr.f32.mxu0 0.0
    %1440 = vmatmul.mubr.f32.gmra.mrb[0].mxu0 %v1338
    %v1441 = vpop.f32.mrb[0].mxu0
    %v1442 = vadd.f32 %v1313, %v1441
    %v1443 = vpop.f32.mrb[0].mxu0
    %1444 = vdwg.mxu0
    %v1445 = vld [vmem:[%s1 + $0xb8] sm:$0xff]
    %v1446 = vld [vmem:[%s1 + $0xc0] sm:$0xff]
    %v1447 = vld [vmem:[%s1 + $0xc8] sm:$0xff]
    %v1448 = vld [vmem:[%s1 + $0xd0] sm:$0xff]
    %v1450 = vsel %vm715, %v1115, 0
    %v1453 = vsel %vm715, %v1116, 0
    %v1456 = vsel %vm715, %v1117, 0
    %v1459 = vsel %vm715, %v1118, 0
    %v1462 = vsel %vm715, %v1119, 0
    %v1465 = vsel %vm715, %v1120, 0
    %v1468 = vsel %vm715, %v1121, 0
    %v1471 = vsel %vm715, %v1122, 0
    %1473 = vmatprep.subr.mxu0 0.0
    %1474 = vmatpush1.msra.mxu0 %v1445
    %1475 = vmatprep.subr.mxu0 0.0
    %1476 = vmatpush1.msra.mxu0 %v1446
    %1477 = vmatprep.subr.mxu0 0.0
    %1478 = vmatpush1.msra.mxu0 %v1447
    %1479 = vmatprep.subr.mxu0 0.0
    %1480 = vmatpush1.msra.mxu0 %v1448
    %1481 = vmatprep.subr.mxu0 0.0
    %1482 = vmatpush1.msra.mxu0 0.0
    %1483 = vmatprep.subr.mxu0 0.0
    %1484 = vmatpush1.msra.mxu0 0.0
    %1485 = vmatprep.subr.mxu0 0.0
    %1486 = vmatpush1.msra.mxu0 0.0
    %1487 = vmatprep.subr.mxu0 0.0
    %1488 = vmatpush1.msra.mxu0 0.0
    %1489 = vmatprep.subr.mxu0 0.0
    %1490 = vmatpush1.msra.mxu0 0.0
    %1491 = vmatprep.subr.mxu0 0.0
    %1492 = vmatpush1.msra.mxu0 0.0
    %1493 = vmatprep.subr.mxu0 0.0
    %1494 = vmatpush1.msra.mxu0 0.0
    %1495 = vmatprep.subr.mxu0 0.0
    %1496 = vmatpush1.msra.mxu0 0.0
    %1497 = vmatprep.subr.mxu0 0.0
    %1498 = vmatpush1.msra.mxu0 0.0
    %1499 = vmatprep.subr.mxu0 0.0
    %1500 = vmatpush1.msra.mxu0 0.0
    %1501 = vmatprep.subr.mxu0 0.0
    %1502 = vmatpush1.msra.mxu0 0.0
    %1503 = vmatprep.subr.mxu0 0.0
    %1504 = vmatpush1.msra.mxu0 0.0
    %1505 = vmatprep.subr.mxu0 0.0
    %1506 = vmatpush1.msra.mxu0 0.0
    %1507 = vmatprep.subr.mxu0 0.0
    %1508 = vmatpush1.msra.mxu0 0.0
    %1509 = vmatprep.subr.mxu0 0.0
    %1510 = vmatpush1.msra.mxu0 0.0
    %1511 = vmatprep.subr.mxu0 0.0
    %1512 = vmatpush1.msra.mxu0 0.0
    %1513 = vmatprep.subr.mxu0 0.0
    %1514 = vmatpush1.msra.mxu0 0.0
    %1515 = vmatprep.subr.mxu0 0.0
    %1516 = vmatpush1.msra.mxu0 0.0
    %1517 = vmatprep.subr.mxu0 0.0
    %1518 = vmatpush1.msra.mxu0 0.0
    %1519 = vmatprep.subr.mxu0 0.0
    %1520 = vmatpush1.msra.mxu0 0.0
    %1521 = vmatprep.subr.mxu0 0.0
    %1522 = vmatpush1.msra.mxu0 0.0
    %1523 = vmatprep.subr.mxu0 0.0
    %1524 = vmatpush1.msra.mxu0 0.0
    %1525 = vmatprep.subr.mxu0 0.0
    %1526 = vmatpush1.msra.mxu0 0.0
    %1527 = vmatprep.subr.mxu0 0.0
    %1528 = vmatpush1.msra.mxu0 0.0
    %1529 = vmatprep.subr.mxu0 0.0
    %1530 = vmatpush1.msra.mxu0 0.0
    %1531 = vmatprep.subr.mxu0 0.0
    %1532 = vmatpush1.msra.mxu0 0.0
    %1533 = vmatprep.subr.mxu0 0.0
    %1534 = vmatpush1.msra.mxu0 0.0
    %1535 = vmatprep.subr.mxu0 0.0
    %1536 = vmatpush1.msra.mxu0 0.0
    %1537 = vmatprep.mubr.f32.mxu0 0.0
    %1538 = vmatmul.mubr.f32.gmra.mrb[0].mxu0 %v1450
    %v1539 = vpop.f32.mrb[0].mxu0
    %v1540 = vadd.f32 0.0, %v1539
    %v1541 = vpop.f32.mrb[0].mxu0
    %1542 = vmatprep.mubr.f32.mxu0 0.0
    %1543 = vmatmul.mubr.f32.gmra.mrb[0].mxu0 %v1453
    %v1544 = vpop.f32.mrb[0].mxu0
    %v1545 = vadd.f32 0.0, %v1544
    %v1546 = vpop.f32.mrb[0].mxu0
    %1547 = vmatprep.mubr.f32.mxu0 0.0
    %1548 = vmatmul.mubr.f32.gmra.mrb[0].mxu0 %v1456
    %v1549 = vpop.f32.mrb[0].mxu0
    %v1550 = vadd.f32 0.0, %v1549
    %v1551 = vpop.f32.mrb[0].mxu0
    %1552 = vmatprep.mubr.f32.mxu0 0.0
    %1553 = vmatmul.mubr.f32.gmra.mrb[0].mxu0 %v1459
    %v1554 = vpop.f32.mrb[0].mxu0
    %v1555 = vadd.f32 0.0, %v1554
    %v1556 = vpop.f32.mrb[0].mxu0
    %1557 = vmatprep.mubr.f32.mxu0 0.0
    %1558 = vmatmul.mubr.f32.gmra.mrb[0].mxu0 %v1462
    %v1559 = vpop.f32.mrb[0].mxu0
    %v1560 = vadd.f32 0.0, %v1559
    %v1561 = vpop.f32.mrb[0].mxu0
    %1562 = vmatprep.mubr.f32.mxu0 0.0
    %1563 = vmatmul.mubr.f32.gmra.mrb[0].mxu0 %v1465
    %v1564 = vpop.f32.mrb[0].mxu0
    %v1565 = vadd.f32 0.0, %v1564
    %v1566 = vpop.f32.mrb[0].mxu0
    %1567 = vmatprep.mubr.f32.mxu0 0.0
    %1568 = vmatmul.mubr.f32.gmra.mrb[0].mxu0 %v1468
    %v1569 = vpop.f32.mrb[0].mxu0
    %v1570 = vadd.f32 0.0, %v1569
    %v1571 = vpop.f32.mrb[0].mxu0
    %1572 = vmatprep.mubr.f32.mxu0 0.0
    %1573 = vmatmul.mubr.f32.gmra.mrb[0].mxu0 %v1471
    %v1574 = vpop.f32.mrb[0].mxu0
    %v1575 = vadd.f32 0.0, %v1574
    %v1576 = vpop.f32.mrb[0].mxu0
    %1577 = vdwg.mxu0
    %v1578 = vadd.f32 %v1407, %v1540
    %v1579 = vadd.f32 %v1412, %v1545
    %v1580 = vadd.f32 %v1417, %v1550
    %v1581 = vadd.f32 %v1422, %v1555
    %v1582 = vadd.f32 %v1427, %v1560
    %v1583 = vadd.f32 %v1432, %v1565
    %v1584 = vadd.f32 %v1437, %v1570
    %v1585 = vadd.f32 %v1442, %v1575
    %v1586 = vmax.f32 %v1578, 0.0
    %v1587 = vmax.f32 %v1579, 0.0
    %v1588 = vmax.f32 %v1580, 0.0
    %v1589 = vmax.f32 %v1581, 0.0
    %v1590 = vmax.f32 %v1582, 0.0
    %v1591 = vmax.f32 %v1583, 0.0
    %v1592 = vmax.f32 %v1584, 0.0
    %v1593 = vmax.f32 %v1585, 0.0
    %v1594 = vld [vmem:[%s1 + $0xd8] sm:$0xff]
    %v1595 = vld [vmem:[%s1 + $0xe0] sm:$0xff]
    %v1596 = vld [vmem:[%s1 + $0xe8] sm:$0xff]
    %v1597 = vld [vmem:[%s1 + $0xf0] sm:$0xff]
    %vm1598 = vcmp.lt.s32.totalorder %v113, 16
    %vm1599 = vcmp.lt.s32.totalorder %v114, 16
    %vm1600 = vcmp.lt.s32.totalorder %v115, 16
    %vm1601 = vcmp.lt.s32.totalorder %v116, 16
    %vm1602 = vcmp.lt.s32.totalorder %v117, 16
    %vm1603 = vcmp.lt.s32.totalorder %v118, 16
    %vm1604 = vcmp.lt.s32.totalorder %v119, 16
    %vm1605 = vcmp.lt.s32.totalorder %v120, 16
    %v1606 = vsel %vm1598, 1, 0
    %v1607 = vsel %vm1599, 1, 0
    %v1608 = vsel %vm1600, 1, 0
    %v1609 = vsel %vm1601, 1, 0
    %v1610 = vsel %vm1602, 1, 0
    %v1611 = vsel %vm1603, 1, 0
    %v1612 = vsel %vm1604, 1, 0
    %v1613 = vsel %vm1605, 1, 0
    %vm1614 = vcmp.eq.s32.totalorder %v1606, 1
    %vm1615 = vcmp.eq.s32.totalorder %v1607, 1
    %vm1616 = vcmp.eq.s32.totalorder %v1608, 1
    %vm1617 = vcmp.eq.s32.totalorder %v1609, 1
    %vm1618 = vcmp.eq.s32.totalorder %v1610, 1
    %vm1619 = vcmp.eq.s32.totalorder %v1611, 1
    %vm1620 = vcmp.eq.s32.totalorder %v1612, 1
    %vm1621 = vcmp.eq.s32.totalorder %v1613, 1
    %v1622 = vsel %vm1614, 0.0, %v1592
    %v1623 = vsel %vm1615, 0.0, %v1593
    %v1624 = vsel %vm1616, 0.0, %v1586
    %v1625 = vsel %vm1617, 0.0, %v1587
    %v1626 = vsel %vm1618, 0.0, %v1588
    %v1627 = vsel %vm1619, 0.0, %v1589
    %v1628 = vsel %vm1620, 0.0, %v1590
    %v1629 = vsel %vm1621, 0.0, %v1591
    %v1630 = vld [vmem:[%s1 + $0xf8] sm:$0xff]
    %v1631 = vld [vmem:[%s1 + $0x100] sm:$0xff]
    %v1632 = vld [vmem:[%s1 + $0x108] sm:$0xff]
    %v1633 = vld [vmem:[%s1 + $0x110] sm:$0xff]
    %v1634 = vsel %vm1143, 0.0, %v1593
    %v1635 = vsel %vm1144, 0.0, %v1586
    %v1636 = vsel %vm1145, 0.0, %v1587
    %v1637 = vsel %vm1146, 0.0, %v1588
    %v1638 = vsel %vm1147, 0.0, %v1589
    %v1639 = vsel %vm1148, 0.0, %v1590
    %v1640 = vsel %vm1149, 0.0, %v1591
    %v1641 = vsel %vm1150, 0.0, %v1592
    %v1643 = vsel %vm715, %v1634, 0
    %v1646 = vsel %vm715, %v1635, 0
    %v1649 = vsel %vm715, %v1636, 0
    %v1652 = vsel %vm715, %v1637, 0
    %v1655 = vsel %vm715, %v1638, 0
    %v1658 = vsel %vm715, %v1639, 0
    %v1661 = vsel %vm715, %v1640, 0
    %v1664 = vsel %vm715, %v1641, 0
    %1666 = vmatprep.subr.mxu0 0.0
    %1667 = vmatpush1.msra.mxu0 %v1630
    %1668 = vmatprep.subr.mxu0 0.0
    %1669 = vmatpush1.msra.mxu0 %v1631
    %1670 = vmatprep.subr.mxu0 0.0
    %1671 = vmatpush1.msra.mxu0 %v1632
    %1672 = vmatprep.subr.mxu0 0.0
    %1673 = vmatpush1.msra.mxu0 %v1633
    %1674 = vmatprep.subr.mxu0 0.0
    %1675 = vmatpush1.msra.mxu0 0.0
    %1676 = vmatprep.subr.mxu0 0.0
    %1677 = vmatpush1.msra.mxu0 0.0
    %1678 = vmatprep.subr.mxu0 0.0
    %1679 = vmatpush1.msra.mxu0 0.0
    %1680 = vmatprep.subr.mxu0 0.0
    %1681 = vmatpush1.msra.mxu0 0.0
    %1682 = vmatprep.subr.mxu0 0.0
    %1683 = vmatpush1.msra.mxu0 0.0
    %1684 = vmatprep.subr.mxu0 0.0
    %1685 = vmatpush1.msra.mxu0 0.0
    %1686 = vmatprep.subr.mxu0 0.0
    %1687 = vmatpush1.msra.mxu0 0.0
    %1688 = vmatprep.subr.mxu0 0.0
    %1689 = vmatpush1.msra.mxu0 0.0
    %1690 = vmatprep.subr.mxu0 0.0
    %1691 = vmatpush1.msra.mxu0 0.0
    %1692 = vmatprep.subr.mxu0 0.0
    %1693 = vmatpush1.msra.mxu0 0.0
    %1694 = vmatprep.subr.mxu0 0.0
    %1695 = vmatpush1.msra.mxu0 0.0
    %1696 = vmatprep.subr.mxu0 0.0
    %1697 = vmatpush1.msra.mxu0 0.0
    %1698 = vmatprep.subr.mxu0 0.0
    %1699 = vmatpush1.msra.mxu0 0.0
    %1700 = vmatprep.subr.mxu0 0.0
    %1701 = vmatpush1.msra.mxu0 0.0
    %1702 = vmatprep.subr.mxu0 0.0
    %1703 = vmatpush1.msra.mxu0 0.0
    %1704 = vmatprep.subr.mxu0 0.0
    %1705 = vmatpush1.msra.mxu0 0.0
    %1706 = vmatprep.subr.mxu0 0.0
    %1707 = vmatpush1.msra.mxu0 0.0
    %1708 = vmatprep.subr.mxu0 0.0
    %1709 = vmatpush1.msra.mxu0 0.0
    %1710 = vmatprep.subr.mxu0 0.0
    %1711 = vmatpush1.msra.mxu0 0.0
    %1712 = vmatprep.subr.mxu0 0.0
    %1713 = vmatpush1.msra.mxu0 0.0
    %1714 = vmatprep.subr.mxu0 0.0
    %1715 = vmatpush1.msra.mxu0 0.0
    %1716 = vmatprep.subr.mxu0 0.0
    %1717 = vmatpush1.msra.mxu0 0.0
    %1718 = vmatprep.subr.mxu0 0.0
    %1719 = vmatpush1.msra.mxu0 0.0
    %1720 = vmatprep.subr.mxu0 0.0
    %1721 = vmatpush1.msra.mxu0 0.0
    %1722 = vmatprep.subr.mxu0 0.0
    %1723 = vmatpush1.msra.mxu0 0.0
    %1724 = vmatprep.subr.mxu0 0.0
    %1725 = vmatpush1.msra.mxu0 0.0
    %1726 = vmatprep.subr.mxu0 0.0
    %1727 = vmatpush1.msra.mxu0 0.0
    %1728 = vmatprep.subr.mxu0 0.0
    %1729 = vmatpush1.msra.mxu0 0.0
    %1730 = vmatprep.mubr.f32.mxu0 0.0
    %1731 = vmatmul.mubr.f32.gmra.mrb[0].mxu0 %v1643
    %v1732 = vpop.f32.mrb[0].mxu0
    %v1733 = vadd.f32 0.0, %v1732
    %v1734 = vpop.f32.mrb[0].mxu0
    %1735 = vmatprep.mubr.f32.mxu0 0.0
    %1736 = vmatmul.mubr.f32.gmra.mrb[0].mxu0 %v1646
    %v1737 = vpop.f32.mrb[0].mxu0
    %v1738 = vadd.f32 0.0, %v1737
    %v1739 = vpop.f32.mrb[0].mxu0
    %1740 = vmatprep.mubr.f32.mxu0 0.0
    %1741 = vmatmul.mubr.f32.gmra.mrb[0].mxu0 %v1649
    %v1742 = vpop.f32.mrb[0].mxu0
    %v1743 = vadd.f32 0.0, %v1742
    %v1744 = vpop.f32.mrb[0].mxu0
    %1745 = vmatprep.mubr.f32.mxu0 0.0
    %1746 = vmatmul.mubr.f32.gmra.mrb[0].mxu0 %v1652
    %v1747 = vpop.f32.mrb[0].mxu0
    %v1748 = vadd.f32 0.0, %v1747
    %v1749 = vpop.f32.mrb[0].mxu0
    %1750 = vmatprep.mubr.f32.mxu0 0.0
    %1751 = vmatmul.mubr.f32.gmra.mrb[0].mxu0 %v1655
    %v1752 = vpop.f32.mrb[0].mxu0
    %v1753 = vadd.f32 0.0, %v1752
    %v1754 = vpop.f32.mrb[0].mxu0
    %1755 = vmatprep.mubr.f32.mxu0 0.0
    %1756 = vmatmul.mubr.f32.gmra.mrb[0].mxu0 %v1658
    %v1757 = vpop.f32.mrb[0].mxu0
    %v1758 = vadd.f32 0.0, %v1757
    %v1759 = vpop.f32.mrb[0].mxu0
    %1760 = vmatprep.mubr.f32.mxu0 0.0
    %1761 = vmatmul.mubr.f32.gmra.mrb[0].mxu0 %v1661
    %v1762 = vpop.f32.mrb[0].mxu0
    %v1763 = vadd.f32 0.0, %v1762
    %v1764 = vpop.f32.mrb[0].mxu0
    %1765 = vmatprep.mubr.f32.mxu0 0.0
    %1766 = vmatmul.mubr.f32.gmra.mrb[0].mxu0 %v1664
    %v1767 = vpop.f32.mrb[0].mxu0
    %v1768 = vadd.f32 0.0, %v1767
    %v1769 = vpop.f32.mrb[0].mxu0
    %1770 = vdwg.mxu0
    %v1772 = vsel %vm715, %v1622, 0
    %v1775 = vsel %vm715, %v1623, 0
    %v1778 = vsel %vm715, %v1624, 0
    %v1781 = vsel %vm715, %v1625, 0
    %v1784 = vsel %vm715, %v1626, 0
    %v1787 = vsel %vm715, %v1627, 0
    %v1790 = vsel %vm715, %v1628, 0
    %v1793 = vsel %vm715, %v1629, 0
    %1795 = vmatprep.subr.mxu0 0.0
    %1796 = vmatpush1.msra.mxu0 %v1594
    %1797 = vmatprep.subr.mxu0 0.0
    %1798 = vmatpush1.msra.mxu0 %v1595
    %1799 = vmatprep.subr.mxu0 0.0
    %1800 = vmatpush1.msra.mxu0 %v1596
    %1801 = vmatprep.subr.mxu0 0.0
    %1802 = vmatpush1.msra.mxu0 %v1597
    %1803 = vmatprep.subr.mxu0 0.0
    %1804 = vmatpush1.msra.mxu0 0.0
    %1805 = vmatprep.subr.mxu0 0.0
    %1806 = vmatpush1.msra.mxu0 0.0
    %1807 = vmatprep.subr.mxu0 0.0
    %1808 = vmatpush1.msra.mxu0 0.0
    %1809 = vmatprep.subr.mxu0 0.0
    %1810 = vmatpush1.msra.mxu0 0.0
    %1811 = vmatprep.subr.mxu0 0.0
    %1812 = vmatpush1.msra.mxu0 0.0
    %1813 = vmatprep.subr.mxu0 0.0
    %1814 = vmatpush1.msra.mxu0 0.0
    %1815 = vmatprep.subr.mxu0 0.0
    %1816 = vmatpush1.msra.mxu0 0.0
    %1817 = vmatprep.subr.mxu0 0.0
    %1818 = vmatpush1.msra.mxu0 0.0
    %1819 = vmatprep.subr.mxu0 0.0
    %1820 = vmatpush1.msra.mxu0 0.0
    %1821 = vmatprep.subr.mxu0 0.0
    %1822 = vmatpush1.msra.mxu0 0.0
    %1823 = vmatprep.subr.mxu0 0.0
    %1824 = vmatpush1.msra.mxu0 0.0
    %1825 = vmatprep.subr.mxu0 0.0
    %1826 = vmatpush1.msra.mxu0 0.0
    %1827 = vmatprep.subr.mxu0 0.0
    %1828 = vmatpush1.msra.mxu0 0.0
    %1829 = vmatprep.subr.mxu0 0.0
    %1830 = vmatpush1.msra.mxu0 0.0
    %1831 = vmatprep.subr.mxu0 0.0
    %1832 = vmatpush1.msra.mxu0 0.0
    %1833 = vmatprep.subr.mxu0 0.0
    %1834 = vmatpush1.msra.mxu0 0.0
    %1835 = vmatprep.subr.mxu0 0.0
    %1836 = vmatpush1.msra.mxu0 0.0
    %1837 = vmatprep.subr.mxu0 0.0
    %1838 = vmatpush1.msra.mxu0 0.0
    %1839 = vmatprep.subr.mxu0 0.0
    %1840 = vmatpush1.msra.mxu0 0.0
    %1841 = vmatprep.subr.mxu0 0.0
    %1842 = vmatpush1.msra.mxu0 0.0
    %1843 = vmatprep.subr.mxu0 0.0
    %1844 = vmatpush1.msra.mxu0 0.0
    %1845 = vmatprep.subr.mxu0 0.0
    %1846 = vmatpush1.msra.mxu0 0.0
    %1847 = vmatprep.subr.mxu0 0.0
    %1848 = vmatpush1.msra.mxu0 0.0
    %1849 = vmatprep.subr.mxu0 0.0
    %1850 = vmatpush1.msra.mxu0 0.0
    %1851 = vmatprep.subr.mxu0 0.0
    %1852 = vmatpush1.msra.mxu0 0.0
    %1853 = vmatprep.subr.mxu0 0.0
    %1854 = vmatpush1.msra.mxu0 0.0
    %1855 = vmatprep.subr.mxu0 0.0
    %1856 = vmatpush1.msra.mxu0 0.0
    %1857 = vmatprep.subr.mxu0 0.0
    %1858 = vmatpush1.msra.mxu0 0.0
    %1859 = vmatprep.mubr.f32.mxu0 0.0
    %1860 = vmatmul.mubr.f32.gmra.mrb[0].mxu0 %v1772
    %v1861 = vpop.f32.mrb[0].mxu0
    %v1862 = vadd.f32 %v1733, %v1861
    %v1863 = vpop.f32.mrb[0].mxu0
    %1864 = vmatprep.mubr.f32.mxu0 0.0
    %1865 = vmatmul.mubr.f32.gmra.mrb[0].mxu0 %v1775
    %v1866 = vpop.f32.mrb[0].mxu0
    %v1867 = vadd.f32 %v1738, %v1866
    %v1868 = vpop.f32.mrb[0].mxu0
    %1869 = vmatprep.mubr.f32.mxu0 0.0
    %1870 = vmatmul.mubr.f32.gmra.mrb[0].mxu0 %v1778
    %v1871 = vpop.f32.mrb[0].mxu0
    %v1872 = vadd.f32 %v1743, %v1871
    %v1873 = vpop.f32.mrb[0].mxu0
    %1874 = vmatprep.mubr.f32.mxu0 0.0
    %1875 = vmatmul.mubr.f32.gmra.mrb[0].mxu0 %v1781
    %v1876 = vpop.f32.mrb[0].mxu0
    %v1877 = vadd.f32 %v1748, %v1876
    %v1878 = vpop.f32.mrb[0].mxu0
    %1879 = vmatprep.mubr.f32.mxu0 0.0
    %1880 = vmatmul.mubr.f32.gmra.mrb[0].mxu0 %v1784
    %v1881 = vpop.f32.mrb[0].mxu0
    %v1882 = vadd.f32 %v1753, %v1881
    %v1883 = vpop.f32.mrb[0].mxu0
    %1884 = vmatprep.mubr.f32.mxu0 0.0
    %1885 = vmatmul.mubr.f32.gmra.mrb[0].mxu0 %v1787
    %v1886 = vpop.f32.mrb[0].mxu0
    %v1887 = vadd.f32 %v1758, %v1886
    %v1888 = vpop.f32.mrb[0].mxu0
    %1889 = vmatprep.mubr.f32.mxu0 0.0
    %1890 = vmatmul.mubr.f32.gmra.mrb[0].mxu0 %v1790
    %v1891 = vpop.f32.mrb[0].mxu0
    %v1892 = vadd.f32 %v1763, %v1891
    %v1893 = vpop.f32.mrb[0].mxu0
    %1894 = vmatprep.mubr.f32.mxu0 0.0
    %1895 = vmatmul.mubr.f32.gmra.mrb[0].mxu0 %v1793
    %v1896 = vpop.f32.mrb[0].mxu0
    %v1897 = vadd.f32 %v1768, %v1896
    %v1898 = vpop.f32.mrb[0].mxu0
    %1899 = vdwg.mxu0
    %v1900 = vld [vmem:[%s1 + $0x118] sm:$0xff]
    %v1901 = vld [vmem:[%s1 + $0x120] sm:$0xff]
    %v1902 = vld [vmem:[%s1 + $0x128] sm:$0xff]
    %v1903 = vld [vmem:[%s1 + $0x130] sm:$0xff]
    %v1905 = vsel %vm715, %v1586, 0
    %v1908 = vsel %vm715, %v1587, 0
    %v1911 = vsel %vm715, %v1588, 0
    %v1914 = vsel %vm715, %v1589, 0
    %v1917 = vsel %vm715, %v1590, 0
    %v1920 = vsel %vm715, %v1591, 0
    %v1923 = vsel %vm715, %v1592, 0
    %v1926 = vsel %vm715, %v1593, 0
    %1928 = vmatprep.subr.mxu0 0.0
    %1929 = vmatpush1.msra.mxu0 %v1900
    %1930 = vmatprep.subr.mxu0 0.0
    %1931 = vmatpush1.msra.mxu0 %v1901
    %1932 = vmatprep.subr.mxu0 0.0
    %1933 = vmatpush1.msra.mxu0 %v1902
    %1934 = vmatprep.subr.mxu0 0.0
    %1935 = vmatpush1.msra.mxu0 %v1903
    %1936 = vmatprep.subr.mxu0 0.0
    %1937 = vmatpush1.msra.mxu0 0.0
    %1938 = vmatprep.subr.mxu0 0.0
    %1939 = vmatpush1.msra.mxu0 0.0
    %1940 = vmatprep.subr.mxu0 0.0
    %1941 = vmatpush1.msra.mxu0 0.0
    %1942 = vmatprep.subr.mxu0 0.0
    %1943 = vmatpush1.msra.mxu0 0.0
    %1944 = vmatprep.subr.mxu0 0.0
    %1945 = vmatpush1.msra.mxu0 0.0
    %1946 = vmatprep.subr.mxu0 0.0
    %1947 = vmatpush1.msra.mxu0 0.0
    %1948 = vmatprep.subr.mxu0 0.0
    %1949 = vmatpush1.msra.mxu0 0.0
    %1950 = vmatprep.subr.mxu0 0.0
    %1951 = vmatpush1.msra.mxu0 0.0
    %1952 = vmatprep.subr.mxu0 0.0
    %1953 = vmatpush1.msra.mxu0 0.0
    %1954 = vmatprep.subr.mxu0 0.0
    %1955 = vmatpush1.msra.mxu0 0.0
    %1956 = vmatprep.subr.mxu0 0.0
    %1957 = vmatpush1.msra.mxu0 0.0
    %1958 = vmatprep.subr.mxu0 0.0
    %1959 = vmatpush1.msra.mxu0 0.0
    %1960 = vmatprep.subr.mxu0 0.0
    %1961 = vmatpush1.msra.mxu0 0.0
    %1962 = vmatprep.subr.mxu0 0.0
    %1963 = vmatpush1.msra.mxu0 0.0
    %1964 = vmatprep.subr.mxu0 0.0
    %1965 = vmatpush1.msra.mxu0 0.0
    %1966 = vmatprep.subr.mxu0 0.0
    %1967 = vmatpush1.msra.mxu0 0.0
    %1968 = vmatprep.subr.mxu0 0.0
    %1969 = vmatpush1.msra.mxu0 0.0
    %1970 = vmatprep.subr.mxu0 0.0
    %1971 = vmatpush1.msra.mxu0 0.0
    %1972 = vmatprep.subr.mxu0 0.0
    %1973 = vmatpush1.msra.mxu0 0.0
    %1974 = vmatprep.subr.mxu0 0.0
    %1975 = vmatpush1.msra.mxu0 0.0
    %1976 = vmatprep.subr.mxu0 0.0
    %1977 = vmatpush1.msra.mxu0 0.0
    %1978 = vmatprep.subr.mxu0 0.0
    %1979 = vmatpush1.msra.mxu0 0.0
    %1980 = vmatprep.subr.mxu0 0.0
    %1981 = vmatpush1.msra.mxu0 0.0
    %1982 = vmatprep.subr.mxu0 0.0
    %1983 = vmatpush1.msra.mxu0 0.0
    %1984 = vmatprep.subr.mxu0 0.0
    %1985 = vmatpush1.msra.mxu0 0.0
    %1986 = vmatprep.subr.mxu0 0.0
    %1987 = vmatpush1.msra.mxu0 0.0
    %1988 = vmatprep.subr.mxu0 0.0
    %1989 = vmatpush1.msra.mxu0 0.0
    %1990 = vmatprep.subr.mxu0 0.0
    %1991 = vmatpush1.msra.mxu0 0.0
    %1992 = vmatprep.mubr.f32.mxu0 0.0
    %1993 = vmatmul.mubr.f32.gmra.mrb[0].mxu0 %v1905
    %v1994 = vpop.f32.mrb[0].mxu0
    %v1995 = vadd.f32 0.0, %v1994
    %v1996 = vpop.f32.mrb[0].mxu0
    %1997 = vmatprep.mubr.f32.mxu0 0.0
    %1998 = vmatmul.mubr.f32.gmra.mrb[0].mxu0 %v1908
    %v1999 = vpop.f32.mrb[0].mxu0
    %v2000 = vadd.f32 0.0, %v1999
    %v2001 = vpop.f32.mrb[0].mxu0
    %2002 = vmatprep.mubr.f32.mxu0 0.0
    %2003 = vmatmul.mubr.f32.gmra.mrb[0].mxu0 %v1911
    %v2004 = vpop.f32.mrb[0].mxu0
    %v2005 = vadd.f32 0.0, %v2004
    %v2006 = vpop.f32.mrb[0].mxu0
    %2007 = vmatprep.mubr.f32.mxu0 0.0
    %2008 = vmatmul.mubr.f32.gmra.mrb[0].mxu0 %v1914
    %v2009 = vpop.f32.mrb[0].mxu0
    %v2010 = vadd.f32 0.0, %v2009
    %v2011 = vpop.f32.mrb[0].mxu0
    %2012 = vmatprep.mubr.f32.mxu0 0.0
    %2013 = vmatmul.mubr.f32.gmra.mrb[0].mxu0 %v1917
    %v2014 = vpop.f32.mrb[0].mxu0
    %v2015 = vadd.f32 0.0, %v2014
    %v2016 = vpop.f32.mrb[0].mxu0
    %2017 = vmatprep.mubr.f32.mxu0 0.0
    %2018 = vmatmul.mubr.f32.gmra.mrb[0].mxu0 %v1920
    %v2019 = vpop.f32.mrb[0].mxu0
    %v2020 = vadd.f32 0.0, %v2019
    %v2021 = vpop.f32.mrb[0].mxu0
    %2022 = vmatprep.mubr.f32.mxu0 0.0
    %2023 = vmatmul.mubr.f32.gmra.mrb[0].mxu0 %v1923
    %v2024 = vpop.f32.mrb[0].mxu0
    %v2025 = vadd.f32 0.0, %v2024
    %v2026 = vpop.f32.mrb[0].mxu0
    %2027 = vmatprep.mubr.f32.mxu0 0.0
    %2028 = vmatmul.mubr.f32.gmra.mrb[0].mxu0 %v1926
    %v2029 = vpop.f32.mrb[0].mxu0
    %v2030 = vadd.f32 0.0, %v2029
    %v2031 = vpop.f32.mrb[0].mxu0
    %2032 = vdwg.mxu0
    %v2033 = vadd.f32 %v1862, %v1995
    %v2034 = vadd.f32 %v1867, %v2000
    %v2035 = vadd.f32 %v1872, %v2005
    %v2036 = vadd.f32 %v1877, %v2010
    %v2037 = vadd.f32 %v1882, %v2015
    %v2038 = vadd.f32 %v1887, %v2020
    %v2039 = vadd.f32 %v1892, %v2025
    %v2040 = vadd.f32 %v1897, %v2030
    %v2041 = vmax.f32 %v2033, 0.0
    %v2042 = vmax.f32 %v2034, 0.0
    %v2043 = vmax.f32 %v2035, 0.0
    %v2044 = vmax.f32 %v2036, 0.0
    %v2045 = vmax.f32 %v2037, 0.0
    %v2046 = vmax.f32 %v2038, 0.0
    %v2047 = vmax.f32 %v2039, 0.0
    %v2048 = vmax.f32 %v2040, 0.0
    %v2049 = vld [vmem:[%s1 + $0x138] sm:$0xff]
    %v2050 = vld [vmem:[%s1 + $0x140] sm:$0xff]
    %v2051 = vld [vmem:[%s1 + $0x148] sm:$0xff]
    %v2052 = vld [vmem:[%s1 + $0x150] sm:$0xff]
    %v2053 = vsel %vm1614, 0.0, %v2047
    %v2054 = vsel %vm1615, 0.0, %v2048
    %v2055 = vsel %vm1616, 0.0, %v2041
    %v2056 = vsel %vm1617, 0.0, %v2042
    %v2057 = vsel %vm1618, 0.0, %v2043
    %v2058 = vsel %vm1619, 0.0, %v2044
    %v2059 = vsel %vm1620, 0.0, %v2045
    %v2060 = vsel %vm1621, 0.0, %v2046
    %v2061 = vld [vmem:[%s1 + $0x158] sm:$0xff]
    %v2062 = vld [vmem:[%s1 + $0x160] sm:$0xff]
    %v2063 = vld [vmem:[%s1 + $0x168] sm:$0xff]
    %v2064 = vld [vmem:[%s1 + $0x170] sm:$0xff]
    %v2066 = vsel %vm715, %v2041, 0
    %v2069 = vsel %vm715, %v2042, 0
    %v2072 = vsel %vm715, %v2043, 0
    %v2075 = vsel %vm715, %v2044, 0
    %v2078 = vsel %vm715, %v2045, 0
    %v2081 = vsel %vm715, %v2046, 0
    %v2084 = vsel %vm715, %v2047, 0
    %v2087 = vsel %vm715, %v2048, 0
    %2089 = vmatprep.subr.mxu0 0.0
    %2090 = vmatpush1.msra.mxu0 %v2061
    %2091 = vmatprep.subr.mxu0 0.0
    %2092 = vmatpush1.msra.mxu0 %v2062
    %2093 = vmatprep.subr.mxu0 0.0
    %2094 = vmatpush1.msra.mxu0 %v2063
    %2095 = vmatprep.subr.mxu0 0.0
    %2096 = vmatpush1.msra.mxu0 %v2064
    %2097 = vmatprep.subr.mxu0 0.0
    %2098 = vmatpush1.msra.mxu0 0.0
    %2099 = vmatprep.subr.mxu0 0.0
    %2100 = vmatpush1.msra.mxu0 0.0
    %2101 = vmatprep.subr.mxu0 0.0
    %2102 = vmatpush1.msra.mxu0 0.0
    %2103 = vmatprep.subr.mxu0 0.0
    %2104 = vmatpush1.msra.mxu0 0.0
    %2105 = vmatprep.subr.mxu0 0.0
    %2106 = vmatpush1.msra.mxu0 0.0
    %2107 = vmatprep.subr.mxu0 0.0
    %2108 = vmatpush1.msra.mxu0 0.0
    %2109 = vmatprep.subr.mxu0 0.0
    %2110 = vmatpush1.msra.mxu0 0.0
    %2111 = vmatprep.subr.mxu0 0.0
    %2112 = vmatpush1.msra.mxu0 0.0
    %2113 = vmatprep.subr.mxu0 0.0
    %2114 = vmatpush1.msra.mxu0 0.0
    %2115 = vmatprep.subr.mxu0 0.0
    %2116 = vmatpush1.msra.mxu0 0.0
    %2117 = vmatprep.subr.mxu0 0.0
    %2118 = vmatpush1.msra.mxu0 0.0
    %2119 = vmatprep.subr.mxu0 0.0
    %2120 = vmatpush1.msra.mxu0 0.0
    %2121 = vmatprep.subr.mxu0 0.0
    %2122 = vmatpush1.msra.mxu0 0.0
    %2123 = vmatprep.subr.mxu0 0.0
    %2124 = vmatpush1.msra.mxu0 0.0
    %2125 = vmatprep.subr.mxu0 0.0
    %2126 = vmatpush1.msra.mxu0 0.0
    %2127 = vmatprep.subr.mxu0 0.0
    %2128 = vmatpush1.msra.mxu0 0.0
    %2129 = vmatprep.subr.mxu0 0.0
    %2130 = vmatpush1.msra.mxu0 0.0
    %2131 = vmatprep.subr.mxu0 0.0
    %2132 = vmatpush1.msra.mxu0 0.0
    %2133 = vmatprep.subr.mxu0 0.0
    %2134 = vmatpush1.msra.mxu0 0.0
    %2135 = vmatprep.subr.mxu0 0.0
    %2136 = vmatpush1.msra.mxu0 0.0
    %2137 = vmatprep.subr.mxu0 0.0
    %2138 = vmatpush1.msra.mxu0 0.0
    %2139 = vmatprep.subr.mxu0 0.0
    %2140 = vmatpush1.msra.mxu0 0.0
    %2141 = vmatprep.subr.mxu0 0.0
    %2142 = vmatpush1.msra.mxu0 0.0
    %2143 = vmatprep.subr.mxu0 0.0
    %2144 = vmatpush1.msra.mxu0 0.0
    %2145 = vmatprep.subr.mxu0 0.0
    %2146 = vmatpush1.msra.mxu0 0.0
    %2147 = vmatprep.subr.mxu0 0.0
    %2148 = vmatpush1.msra.mxu0 0.0
    %2149 = vmatprep.subr.mxu0 0.0
    %2150 = vmatpush1.msra.mxu0 0.0
    %2151 = vmatprep.subr.mxu0 0.0
    %2152 = vmatpush1.msra.mxu0 0.0
    %2153 = vmatprep.mubr.f32.mxu0 0.0
    %2154 = vmatmul.mubr.f32.gmra.mrb[0].mxu0 %v2066
    %v2155 = vpop.f32.mrb[0].mxu0
    %v2156 = vadd.f32 0.0, %v2155
    %v2157 = vpop.f32.mrb[0].mxu0
    %2158 = vmatprep.mubr.f32.mxu0 0.0
    %2159 = vmatmul.mubr.f32.gmra.mrb[0].mxu0 %v2069
    %v2160 = vpop.f32.mrb[0].mxu0
    %v2161 = vadd.f32 0.0, %v2160
    %v2162 = vpop.f32.mrb[0].mxu0
    %2163 = vmatprep.mubr.f32.mxu0 0.0
    %2164 = vmatmul.mubr.f32.gmra.mrb[0].mxu0 %v2072
    %v2165 = vpop.f32.mrb[0].mxu0
    %v2166 = vadd.f32 0.0, %v2165
    %v2167 = vpop.f32.mrb[0].mxu0
    %2168 = vmatprep.mubr.f32.mxu0 0.0
    %2169 = vmatmul.mubr.f32.gmra.mrb[0].mxu0 %v2075
    %v2170 = vpop.f32.mrb[0].mxu0
    %v2171 = vadd.f32 0.0, %v2170
    %v2172 = vpop.f32.mrb[0].mxu0
    %2173 = vmatprep.mubr.f32.mxu0 0.0
    %2174 = vmatmul.mubr.f32.gmra.mrb[0].mxu0 %v2078
    %v2175 = vpop.f32.mrb[0].mxu0
    %v2176 = vadd.f32 0.0, %v2175
    %v2177 = vpop.f32.mrb[0].mxu0
    %2178 = vmatprep.mubr.f32.mxu0 0.0
    %2179 = vmatmul.mubr.f32.gmra.mrb[0].mxu0 %v2081
    %v2180 = vpop.f32.mrb[0].mxu0
    %v2181 = vadd.f32 0.0, %v2180
    %v2182 = vpop.f32.mrb[0].mxu0
    %2183 = vmatprep.mubr.f32.mxu0 0.0
    %2184 = vmatmul.mubr.f32.gmra.mrb[0].mxu0 %v2084
    %v2185 = vpop.f32.mrb[0].mxu0
    %v2186 = vadd.f32 0.0, %v2185
    %v2187 = vpop.f32.mrb[0].mxu0
    %2188 = vmatprep.mubr.f32.mxu0 0.0
    %2189 = vmatmul.mubr.f32.gmra.mrb[0].mxu0 %v2087
    %v2190 = vpop.f32.mrb[0].mxu0
    %v2191 = vadd.f32 0.0, %v2190
    %v2192 = vpop.f32.mrb[0].mxu0
    %2193 = vdwg.mxu0
    %v2195 = vsel %vm715, %v2053, 0
    %v2198 = vsel %vm715, %v2054, 0
    %v2201 = vsel %vm715, %v2055, 0
    %v2204 = vsel %vm715, %v2056, 0
    %v2207 = vsel %vm715, %v2057, 0
    %v2210 = vsel %vm715, %v2058, 0
    %v2213 = vsel %vm715, %v2059, 0
    %v2216 = vsel %vm715, %v2060, 0
    %2218 = vmatprep.subr.mxu0 0.0
    %2219 = vmatpush1.msra.mxu0 %v2049
    %2220 = vmatprep.subr.mxu0 0.0
    %2221 = vmatpush1.msra.mxu0 %v2050
    %2222 = vmatprep.subr.mxu0 0.0
    %2223 = vmatpush1.msra.mxu0 %v2051
    %2224 = vmatprep.subr.mxu0 0.0
    %2225 = vmatpush1.msra.mxu0 %v2052
    %2226 = vmatprep.subr.mxu0 0.0
    %2227 = vmatpush1.msra.mxu0 0.0
    %2228 = vmatprep.subr.mxu0 0.0
    %2229 = vmatpush1.msra.mxu0 0.0
    %2230 = vmatprep.subr.mxu0 0.0
    %2231 = vmatpush1.msra.mxu0 0.0
    %2232 = vmatprep.subr.mxu0 0.0
    %2233 = vmatpush1.msra.mxu0 0.0
    %2234 = vmatprep.subr.mxu0 0.0
    %2235 = vmatpush1.msra.mxu0 0.0
    %2236 = vmatprep.subr.mxu0 0.0
    %2237 = vmatpush1.msra.mxu0 0.0
    %2238 = vmatprep.subr.mxu0 0.0
    %2239 = vmatpush1.msra.mxu0 0.0
    %2240 = vmatprep.subr.mxu0 0.0
    %2241 = vmatpush1.msra.mxu0 0.0
    %2242 = vmatprep.subr.mxu0 0.0
    %2243 = vmatpush1.msra.mxu0 0.0
    %2244 = vmatprep.subr.mxu0 0.0
    %2245 = vmatpush1.msra.mxu0 0.0
    %2246 = vmatprep.subr.mxu0 0.0
    %2247 = vmatpush1.msra.mxu0 0.0
    %2248 = vmatprep.subr.mxu0 0.0
    %2249 = vmatpush1.msra.mxu0 0.0
    %2250 = vmatprep.subr.mxu0 0.0
    %2251 = vmatpush1.msra.mxu0 0.0
    %2252 = vmatprep.subr.mxu0 0.0
    %2253 = vmatpush1.msra.mxu0 0.0
    %2254 = vmatprep.subr.mxu0 0.0
    %2255 = vmatpush1.msra.mxu0 0.0
    %2256 = vmatprep.subr.mxu0 0.0
    %2257 = vmatpush1.msra.mxu0 0.0
    %2258 = vmatprep.subr.mxu0 0.0
    %2259 = vmatpush1.msra.mxu0 0.0
    %2260 = vmatprep.subr.mxu0 0.0
    %2261 = vmatpush1.msra.mxu0 0.0
    %2262 = vmatprep.subr.mxu0 0.0
    %2263 = vmatpush1.msra.mxu0 0.0
    %2264 = vmatprep.subr.mxu0 0.0
    %2265 = vmatpush1.msra.mxu0 0.0
    %2266 = vmatprep.subr.mxu0 0.0
    %2267 = vmatpush1.msra.mxu0 0.0
    %2268 = vmatprep.subr.mxu0 0.0
    %2269 = vmatpush1.msra.mxu0 0.0
    %2270 = vmatprep.subr.mxu0 0.0
    %2271 = vmatpush1.msra.mxu0 0.0
    %2272 = vmatprep.subr.mxu0 0.0
    %2273 = vmatpush1.msra.mxu0 0.0
    %2274 = vmatprep.subr.mxu0 0.0
    %2275 = vmatpush1.msra.mxu0 0.0
    %2276 = vmatprep.subr.mxu0 0.0
    %2277 = vmatpush1.msra.mxu0 0.0
    %2278 = vmatprep.subr.mxu0 0.0
    %2279 = vmatpush1.msra.mxu0 0.0
    %2280 = vmatprep.subr.mxu0 0.0
    %2281 = vmatpush1.msra.mxu0 0.0
    %2282 = vmatprep.mubr.f32.mxu0 0.0
    %2283 = vmatmul.mubr.f32.gmra.mrb[0].mxu0 %v2195
    %v2284 = vpop.f32.mrb[0].mxu0
    %v2285 = vadd.f32 %v2156, %v2284
    %v2286 = vpop.f32.mrb[0].mxu0
    %2287 = vmatprep.mubr.f32.mxu0 0.0
    %2288 = vmatmul.mubr.f32.gmra.mrb[0].mxu0 %v2198
    %v2289 = vpop.f32.mrb[0].mxu0
    %v2290 = vadd.f32 %v2161, %v2289
    %v2291 = vpop.f32.mrb[0].mxu0
    %2292 = vmatprep.mubr.f32.mxu0 0.0
    %2293 = vmatmul.mubr.f32.gmra.mrb[0].mxu0 %v2201
    %v2294 = vpop.f32.mrb[0].mxu0
    %v2295 = vadd.f32 %v2166, %v2294
    %v2296 = vpop.f32.mrb[0].mxu0
    %2297 = vmatprep.mubr.f32.mxu0 0.0
    %2298 = vmatmul.mubr.f32.gmra.mrb[0].mxu0 %v2204
    %v2299 = vpop.f32.mrb[0].mxu0
    %v2300 = vadd.f32 %v2171, %v2299
    %v2301 = vpop.f32.mrb[0].mxu0
    %2302 = vmatprep.mubr.f32.mxu0 0.0
    %2303 = vmatmul.mubr.f32.gmra.mrb[0].mxu0 %v2207
    %v2304 = vpop.f32.mrb[0].mxu0
    %v2305 = vadd.f32 %v2176, %v2304
    %v2306 = vpop.f32.mrb[0].mxu0
    %2307 = vmatprep.mubr.f32.mxu0 0.0
    %2308 = vmatmul.mubr.f32.gmra.mrb[0].mxu0 %v2210
    %v2309 = vpop.f32.mrb[0].mxu0
    %v2310 = vadd.f32 %v2181, %v2309
    %v2311 = vpop.f32.mrb[0].mxu0
    %2312 = vmatprep.mubr.f32.mxu0 0.0
    %2313 = vmatmul.mubr.f32.gmra.mrb[0].mxu0 %v2213
    %v2314 = vpop.f32.mrb[0].mxu0
    %v2315 = vadd.f32 %v2186, %v2314
    %v2316 = vpop.f32.mrb[0].mxu0
    %2317 = vmatprep.mubr.f32.mxu0 0.0
    %2318 = vmatmul.mubr.f32.gmra.mrb[0].mxu0 %v2216
    %v2319 = vpop.f32.mrb[0].mxu0
    %v2320 = vadd.f32 %v2191, %v2319
    %v2321 = vpop.f32.mrb[0].mxu0
    %2322 = vdwg.mxu0
    %v2323 = vmax.f32 %v2285, 0.0
    %v2324 = vmax.f32 %v2290, 0.0
    %v2325 = vmax.f32 %v2295, 0.0
    %v2326 = vmax.f32 %v2300, 0.0
    %v2327 = vmax.f32 %v2305, 0.0
    %v2328 = vmax.f32 %v2310, 0.0
    %v2329 = vmax.f32 %v2315, 0.0
    %v2330 = vmax.f32 %v2320, 0.0
    %v2331 = vld [vmem:[%s1 + $0x178] sm:$0x1]
    %v2332 = vlaneseq
    %v2333 = vshrl.u32 %v2332, 7
    %v2334 = vsub.s32 0, %v2333
    %v2335 = vrot.slane %v2331, %v2334
    %v2336 = vmul.f32 %v2323, %v2335
    %v2337 = vmul.f32 %v2324, %v2335
    %v2338 = vmul.f32 %v2325, %v2335
    %v2339 = vmul.f32 %v2326, %v2335
    %v2340 = vmul.f32 %v2327, %v2335
    %v2341 = vmul.f32 %v2328, %v2335
    %v2342 = vmul.f32 %v2329, %v2335
    %v2343 = vmul.f32 %v2330, %v2335
    %v2344 = vsel %vm715, %v2336, 0.0
    %2345 = vadd.xlane.f32.xlu0 %v2344
    %v2346 = vpop.xlane.xlu0 %2345
    %v2347 = vsel %vm715, %v2337, 0.0
    %2348 = vadd.xlane.f32.xlu0 %v2347
    %v2349 = vpop.xlane.xlu0 %2348
    %v2350 = vsel %vm715, %v2338, 0.0
    %2351 = vadd.xlane.f32.xlu0 %v2350
    %v2352 = vpop.xlane.xlu0 %2351
    %v2353 = vsel %vm715, %v2339, 0.0
    %2354 = vadd.xlane.f32.xlu0 %v2353
    %v2355 = vpop.xlane.xlu0 %2354
    %v2356 = vsel %vm715, %v2340, 0.0
    %2357 = vadd.xlane.f32.xlu0 %v2356
    %v2358 = vpop.xlane.xlu0 %2357
    %v2359 = vsel %vm715, %v2341, 0.0
    %2360 = vadd.xlane.f32.xlu0 %v2359
    %v2361 = vpop.xlane.xlu0 %2360
    %v2362 = vsel %vm715, %v2342, 0.0
    %2363 = vadd.xlane.f32.xlu0 %v2362
    %v2364 = vpop.xlane.xlu0 %2363
    %v2365 = vsel %vm715, %v2343, 0.0
    %2366 = vadd.xlane.f32.xlu0 %v2365
    %v2367 = vpop.xlane.xlu0 %2366
    %s2368 = sld [smem:[#allocation2]]
    %v2369 = vstv %s2368
    %v2370 = vadd.f32 %v2346, %v2369
    %v2371 = vadd.f32 %v2349, %v2369
    %v2372 = vadd.f32 %v2352, %v2369
    %v2373 = vadd.f32 %v2355, %v2369
    %v2374 = vadd.f32 %v2358, %v2369
    %v2375 = vadd.f32 %v2361, %v2369
    %v2376 = vadd.f32 %v2364, %v2369
    %v2377 = vadd.f32 %v2367, %v2369
    %2378 = vst [vmem:[#allocation3] sm:$0xff] %v2370
    %2379 = vst [vmem:[#allocation3 + $0x8] sm:$0xff] %v2371
    %2380 = vst [vmem:[#allocation3 + $0x10] sm:$0xff] %v2372
    %2381 = vst [vmem:[#allocation3 + $0x18] sm:$0xff] %v2373
    %2382 = vst [vmem:[#allocation3 + $0x20] sm:$0xff] %v2374
    %2383 = vst [vmem:[#allocation3 + $0x28] sm:$0xff] %v2375
    %2384 = vst [vmem:[#allocation3 + $0x30] sm:$0xff] %v2376
    %2385 = vst [vmem:[#allocation3 + $0x38] sm:$0xff] %v2377
    // Predicated region
    $region14: #{tpu_custom_call.1} parent=1 // pred_check
      _
    $region15: #{tpu_custom_call.1} parent=1 // pred_check_branch
      %2387 = sbr.rel (0) target = $region17
    $region16: #{tpu_custom_call.1} parent=1 // pred_region
      %s2389 = ssub.s32 1024, 1024
      %2390 = vsyncadd [#allocation4], %s2389
      %s2391 = sshll.u32 [#allocation3], 4
      %s2392 = int_to_ptr.vmem [resolvable:$true] %s2391
      %2397 = dma.vmem_to_hbm [thread:$0]  %s2392, 1024, %s3, [#allocation4], 128, 128, 8
    $region17: #{tpu_custom_call.1} parent=1 // pred_fallthru
      _
    // Predicated region
    $region18: #{tpu_custom_call.1} parent=1 // pred_check
      _
    $region19: #{tpu_custom_call.1} parent=1 // pred_check_branch
      %2399 = sbr.rel (0) target = $region21
    $region20: #{tpu_custom_call.1} parent=1 // pred_region
      %2400 = dma.done [#allocation4], 1024
    $region21: #{tpu_custom_call.1} parent=1 // pred_fallthru
      _
    %2401 = vsyncpa [#allocation4], 1

</llo_original>
